<compile_context>
chip_gen: v7x
topology: tpu7x:2x2x1
jax: 0.10.0
libtpu: 0.0.40
codegen_flags: <defaults>
</compile_context>

<pallas_src>
import functools

import jax
import jax.numpy as jnp
import numpy as np
from jax import lax
from jax.experimental import pallas as pl
from jax.experimental.pallas import tpu as pltpu


# ----------------------------- Pallas kernel -------------------------------

def _fused_block_kernel(x_ref,
                        dw1_ref, vec1_ref, pw1_ref,
                        dw2_ref, vec2_ref, pw2_ref,
                        out_ref, *, H, W):
    """Whole BasicBlock for one block of packed (batch*channel) rows.

    Layout: rows = nb*C packed (batch, channel) pairs (fills the 8 f32
    sublanes), lanes = H*W flattened spatial (lane-dense, multiple of 128).

      x_ref    : (R, HW)    input rows (also the residual)
      dw*_ref  : (9, R, 1)  per-tap per-row depthwise weights
      vec*_ref : (3, R, 1)  packed [dw_bias, bn_scale, bn_bias (pw bias folded)]
      pw*_ref  : (R, R)     block-diagonal pointwise (1x1) weights
      out_ref  : (R, HW)
    """
    HW = H * W
    x = x_ref[...]                                            # (R, HW)

    # 3x3 zero-padding validity masks, generated in-kernel from a lane iota
    # (VPU comparisons only; no (9, C, HW) weight inflation in HBM/VMEM).
    pos = lax.broadcasted_iota(jnp.int32, (1, HW), 1)
    col = pos % W
    row_mask = {-1: (pos >= W).astype(jnp.float32),
                +1: (pos < (H - 1) * W).astype(jnp.float32)}
    col_mask = {-1: (col >= 1).astype(jnp.float32),
                +1: (col < W - 1).astype(jnp.float32)}

    def sep_conv_bn(inp, dw_ref, vec_ref, pw_ref):
        db, scale, bias = vec_ref[0], vec_ref[1], vec_ref[2]  # (R, 1) each
        acc = jnp.broadcast_to(db, inp.shape)                 # init with dw bias
        # Depthwise 3x3 (padding=1): shared row roll per dy (reused by its
        # three dx taps) + a +-1 lane roll per dx (XLU), masked MAC (VPU).
        for dy in (-1, 0, 1):
            base = inp if dy == 0 else pltpu.roll(inp, shift=(-dy * W) % HW, axis=1)
            if dy != 0:
                base = base * row_mask[dy]
            for dx in (-1, 0, 1):
                tap = base if dx == 0 else pltpu.roll(base, shift=(-dx) % HW, axis=1)
                if dx != 0:
                    tap = tap * col_mask[dx]
                acc = acc + tap * dw_ref[(dy + 1) * 3 + (dx + 1)]
        acc = jnp.maximum(acc, 0.0)                            # ReLU (dw -> pw)
        # Pointwise 1x1 as one block-diagonal matmul over the packed rows.
        # TODO(synk): cast operands to bf16 for the MXU once C >= ~64; at toy
        # channel counts it only costs tolerance.
        y = jnp.dot(pw_ref[...], acc, preferred_element_type=jnp.float32)
        return y * scale + bias                                # folded BN (+pw bias)

    h = jnp.maximum(sep_conv_bn(x, dw1_ref, vec1_ref, pw1_ref), 0.0)
    h = sep_conv_bn(h, dw2_ref, vec2_ref, pw2_ref)
    out_ref[...] = jnp.maximum(h + x, 0.0)                     # residual + ReLU


# ----------------------------- wrapper --------------------------------------

def basic_block_forward(x_nchw, params, eps=1e-5):
    """BasicBlock forward. x_nchw: (N, C, H, W) float32. Returns (N, C, H, W)."""
    N, C, H, W = x_nchw.shape
    HW = H * W

    # Pack several batch images into the sublane axis so each (R, HW) block
    # fills all 8 f32 sublanes and the grid has fewer steps.
    nb = max(1, min(N, 8 // max(C, 1)))
    while nb > 1 and N % nb:
        nb -= 1
    if (nb * C) % 8 and nb != N:
        nb = N                       # full-dim block is always layout-legal
    R = nb * C
    G = N // nb

    x = x_nchw.reshape(N * C, HW).astype(jnp.float32)

    def stage_params(dw_w, dw_b, pw_w, pw_b, bn):
        gamma, beta, mean, var = bn
        scale = gamma / jnp.sqrt(var + eps)
        bias = pw_b * scale + (beta - mean * scale)            # pw bias folded in
        dw = jnp.tile(dw_w.reshape(9, C, 1), (1, nb, 1)).astype(jnp.float32)
        vec = jnp.stack([jnp.tile(dw_b.reshape(C, 1), (nb, 1)),
                         jnp.tile(scale.reshape(C, 1), (nb, 1)),
                         jnp.tile(bias.reshape(C, 1), (nb, 1))]).astype(jnp.float32)
        # Block-diagonal (R, R) pointwise weight: one lane-dense matmul per
        # stage, no mixing across packed batch images.  (Cout, Cin) blocks.
        pw = jnp.kron(jnp.eye(nb, dtype=jnp.float32), pw_w.T.astype(jnp.float32))
        return dw, vec, pw

    st1 = stage_params(params["dw1_w"], params["dw1_b"],
                       params["pw1_w"], params["pw1_b"], params["bn1"])
    st2 = stage_params(params["dw2_w"], params["dw2_b"],
                       params["pw2_w"], params["pw2_b"], params["bn2"])

    kernel = functools.partial(_fused_block_kernel, H=H, W=W)

    def build(single_buffer_consts):
        def const_spec(shape):
            imap = lambda g, _nd=len(shape): (0,) * _nd
            if single_buffer_consts:
                try:
                    # Constant-index operands need only one pipeline buffer.
                    return pl.BlockSpec(shape, imap, pipeline_mode=pl.Buffered(1))
                except Exception:
                    pass
            return pl.BlockSpec(shape, imap)

        def stage_specs():
            return [const_spec((9, R, 1)),
                    const_spec((3, R, 1)),
                    const_spec((R, R))]

        return pl.pallas_call(
            kernel,
            out_shape=jax.ShapeDtypeStruct((N * C, HW), jnp.float32),
            grid_spec=pltpu.PrefetchScalarGridSpec(
                num_scalar_prefetch=0,
                grid=(G,),
                in_specs=[pl.BlockSpec((R, HW), lambda g: (g, 0))]
                         + stage_specs() + stage_specs(),
                out_specs=pl.BlockSpec((R, HW), lambda g: (g, 0)),
            ),
            compiler_params=pltpu.CompilerParams(
                dimension_semantics=("parallel",)),
        )

    try:
        out = build(True)(x, *st1, *st2)
    except Exception:
        # Fallback for jax versions without pipeline_mode support.
        out = build(False)(x, *st1, *st2)

    return out.reshape(N, C, H, W)


# --------------------------- pure-JAX reference ---------------------------

def _fold_bn(gamma, beta, mean, var, eps=1e-5):
    scale = gamma / jnp.sqrt(var + eps)
    bias = beta - mean * scale
    return scale.reshape(1, -1), bias.reshape(1, -1)


def _ref_sepconv(x_nhwc, dww, dwb, pww, pwb):
    C = x_nhwc.shape[-1]
    dw = lax.conv_general_dilated(
        x_nhwc, dww.reshape(3, 3, 1, C), window_strides=(1, 1),
        padding=((1, 1), (1, 1)), feature_group_count=C,
        dimension_numbers=("NHWC", "HWIO", "NHWC")) + dwb
    dw = jnp.maximum(dw, 0.0)
    pw = lax.conv_general_dilated(
        dw, pww.reshape(1, 1, *pww.shape), window_strides=(1, 1),
        padding="VALID", dimension_numbers=("NHWC", "HWIO", "NHWC")) + pwb
    return pw


def basic_block_reference(x_nchw, params):
    x = jnp.transpose(x_nchw, (0, 2, 3, 1)).astype(jnp.float32)
    s1, b1 = _fold_bn(*params["bn1"])
    s2, b2 = _fold_bn(*params["bn2"])
    out = _ref_sepconv(x, params["dw1_w"], params["dw1_b"],
                       params["pw1_w"], params["pw1_b"])
    out = jnp.maximum(out * s1 + b1, 0.0)
    out = _ref_sepconv(out, params["dw2_w"], params["dw2_b"],
                       params["pw2_w"], params["pw2_b"])
    out = out * s2 + b2
    out = jnp.maximum(out + x, 0.0)
    return jnp.transpose(out, (0, 3, 1, 2))


# ------------------------------- main --------------------------------------

if __name__ == "__main__":
    N, C, H, W = 2, 4, 16, 16          # in_channels == out_channels, stride=1
    key = jax.random.PRNGKey(0)
    keys = jax.random.split(key, 16)

    def rnd(k, shape, scale=0.1):
        return (scale * jax.random.normal(k, shape)).astype(jnp.float32)

    params = {
        # conv1: depthwise (3,3,C), pointwise (Cin,Cout)
        "dw1_w": rnd(keys[0], (3, 3, C)),
        "dw1_b": rnd(keys[1], (C,)),
        "pw1_w": rnd(keys[2], (C, C)),
        "pw1_b": rnd(keys[3], (C,)),
        # conv2
        "dw2_w": rnd(keys[4], (3, 3, C)),
        "dw2_b": rnd(keys[5], (C,)),
        "pw2_w": rnd(keys[6], (C, C)),
        "pw2_b": rnd(keys[7], (C,)),
        # bn1 / bn2: (gamma, beta, running_mean, running_var)
        "bn1": (1.0 + rnd(keys[8], (C,)), rnd(keys[9], (C,)),
                rnd(keys[10], (C,)), 1.0 + jnp.abs(rnd(keys[11], (C,)))),
        "bn2": (1.0 + rnd(keys[12], (C,)), rnd(keys[13], (C,)),
                rnd(keys[14], (C,)), 1.0 + jnp.abs(rnd(keys[15], (C,)))),
    }

    x = jax.random.normal(jax.random.PRNGKey(42), (N, C, H, W), jnp.float32)

    out = jax.block_until_ready(basic_block_forward(x, params))
    ref = jax.block_until_ready(basic_block_reference(x, params))

    assert out.shape == (N, C, H, W)
    np.testing.assert_allclose(np.asarray(out), np.asarray(ref),
                               rtol=1e-4, atol=1e-4)
    print("KERNEL_OK")
</pallas_src>

<mosaic_0001>
module attributes {stable_mosaic.version = 11 : i64} {
  func.func @_fused_block_kernel(%arg0: i32, %arg1: memref<8x256xf32, #tpu.memory_space<vmem>>, %arg2: memref<9x8x1xf32, #tpu.memory_space<vmem>>, %arg3: memref<3x8x1xf32, #tpu.memory_space<vmem>>, %arg4: memref<8x8xf32, #tpu.memory_space<vmem>>, %arg5: memref<9x8x1xf32, #tpu.memory_space<vmem>>, %arg6: memref<3x8x1xf32, #tpu.memory_space<vmem>>, %arg7: memref<8x8xf32, #tpu.memory_space<vmem>>, %arg8: memref<8x256xf32, #tpu.memory_space<vmem>>) attributes {dimension_semantics = [#tpu.dimension_semantics<parallel>], iteration_bounds = array<i64: 1>, scalar_prefetch = 0 : i64, scratch_operands = 0 : i64, tpu.core_type = #tpu.core_type<tc>, window_params = [{transform_indices = @transform_0, window_bounds = array<i64: 8, 256>}, {pipeline_mode = #tpu.pipeline_mode<synchronous>, transform_indices = @transform_1, window_bounds = array<i64: 9, 8, 1>}, {pipeline_mode = #tpu.pipeline_mode<synchronous>, transform_indices = @transform_2, window_bounds = array<i64: 3, 8, 1>}, {pipeline_mode = #tpu.pipeline_mode<synchronous>, transform_indices = @transform_3, window_bounds = array<i64: 8, 8>}, {pipeline_mode = #tpu.pipeline_mode<synchronous>, transform_indices = @transform_4, window_bounds = array<i64: 9, 8, 1>}, {pipeline_mode = #tpu.pipeline_mode<synchronous>, transform_indices = @transform_5, window_bounds = array<i64: 3, 8, 1>}, {pipeline_mode = #tpu.pipeline_mode<synchronous>, transform_indices = @transform_6, window_bounds = array<i64: 8, 8>}, {transform_indices = @transform_7, window_bounds = array<i64: 8, 256>}]} {
    %c0 = arith.constant 0 : index
    %c0_0 = arith.constant 0 : index
    %0 = vector.load %arg1[%c0, %c0_0] : memref<8x256xf32, #tpu.memory_space<vmem>>, vector<8x256xf32>
    %1 = tpu.iota {dimensions = array<i32: 1>} : vector<1x256xi32>
    %c16_i32 = arith.constant 16 : i32
    %c0_i32 = arith.constant 0 : i32
    %2 = arith.cmpi eq, %c16_i32, %c0_i32 : i32
    %c1_i32 = arith.constant 1 : i32
    %3 = arith.select %2, %c1_i32, %c16_i32 : i32
    %4 = vector.broadcast %3 : i32 to vector<1x256xi32>
    %5 = arith.remsi %1, %4 : vector<1x256xi32>
    %c0_i32_1 = arith.constant 0 : i32
    %6 = vector.broadcast %c0_i32_1 : i32 to vector<1x256xi32>
    %7 = arith.cmpi ne, %5, %6 : vector<1x256xi32>
    %c0_i32_2 = arith.constant 0 : i32
    %8 = vector.broadcast %c0_i32_2 : i32 to vector<1x256xi32>
    %9 = arith.cmpi slt, %5, %8 : vector<1x256xi32>
    %c0_i32_3 = arith.constant 0 : i32
    %10 = arith.cmpi slt, %3, %c0_i32_3 : i32
    %11 = vector.broadcast %10 : i1 to vector<1x256xi1>
    %12 = vector.broadcast %11 : vector<1x256xi1> to vector<1x256xi1>
    %13 = arith.xori %9, %12 : vector<1x256xi1>
    %14 = arith.andi %13, %7 : vector<1x256xi1>
    %15 = vector.broadcast %3 : i32 to vector<1x256xi32>
    %16 = arith.addi %5, %15 : vector<1x256xi32>
    %17 = arith.select %14, %16, %5 : vector<1x256xi1>, vector<1x256xi32>
    %c16_i32_4 = arith.constant 16 : i32
    %18 = vector.broadcast %c16_i32_4 : i32 to vector<1x256xi32>
    %19 = arith.cmpi sge, %1, %18 : vector<1x256xi32>
    %20 = arith.extui %19 : vector<1x256xi1> to vector<1x256xi32>
    %21 = arith.sitofp %20 : vector<1x256xi32> to vector<1x256xf32>
    %c240_i32 = arith.constant 240 : i32
    %22 = vector.broadcast %c240_i32 : i32 to vector<1x256xi32>
    %23 = arith.cmpi slt, %1, %22 : vector<1x256xi32>
    %24 = arith.extui %23 : vector<1x256xi1> to vector<1x256xi32>
    %25 = arith.sitofp %24 : vector<1x256xi32> to vector<1x256xf32>
    %c1_i32_5 = arith.constant 1 : i32
    %26 = vector.broadcast %c1_i32_5 : i32 to vector<1x256xi32>
    %27 = arith.cmpi sge, %17, %26 : vector<1x256xi32>
    %28 = arith.extui %27 : vector<1x256xi1> to vector<1x256xi32>
    %29 = arith.sitofp %28 : vector<1x256xi32> to vector<1x256xf32>
    %c15_i32 = arith.constant 15 : i32
    %30 = vector.broadcast %c15_i32 : i32 to vector<1x256xi32>
    %31 = arith.cmpi slt, %17, %30 : vector<1x256xi32>
    %32 = arith.extui %31 : vector<1x256xi1> to vector<1x256xi32>
    %33 = arith.sitofp %32 : vector<1x256xi32> to vector<1x256xf32>
    %c0_6 = arith.constant 0 : index
    %c0_7 = arith.constant 0 : index
    %c0_8 = arith.constant 0 : index
    %34 = vector.load %arg3[%c0_6, %c0_7, %c0_8] : memref<3x8x1xf32, #tpu.memory_space<vmem>>, vector<1x8x1xf32>
    %35 = vector.shape_cast %34 : vector<1x8x1xf32> to vector<8x1xf32>
    %c1 = arith.constant 1 : index
    %c0_9 = arith.constant 0 : index
    %c0_10 = arith.constant 0 : index
    %36 = vector.load %arg3[%c1, %c0_9, %c0_10] : memref<3x8x1xf32, #tpu.memory_space<vmem>>, vector<1x8x1xf32>
    %37 = vector.shape_cast %36 : vector<1x8x1xf32> to vector<8x1xf32>
    %c2 = arith.constant 2 : index
    %c0_11 = arith.constant 0 : index
    %c0_12 = arith.constant 0 : index
    %38 = vector.load %arg3[%c2, %c0_11, %c0_12] : memref<3x8x1xf32, #tpu.memory_space<vmem>>, vector<1x8x1xf32>
    %39 = vector.shape_cast %38 : vector<1x8x1xf32> to vector<8x1xf32>
    %40 = vector.shape_cast %35 : vector<8x1xf32> to vector<8x1xf32>
    %41 = vector.broadcast %40 : vector<8x1xf32> to vector<8x256xf32>
    %c16_i32_13 = arith.constant 16 : i32
    %42 = tpu.dynamic_rotate %0 by %c16_i32_13 dim 1 : vector<8x256xf32>, i32 -> vector<8x256xf32>
    %43 = vector.broadcast %21 : vector<1x256xf32> to vector<8x256xf32>
    %44 = arith.mulf %42, %43 : vector<8x256xf32>
    %c1_i32_14 = arith.constant 1 : i32
    %45 = tpu.dynamic_rotate %44 by %c1_i32_14 dim 1 : vector<8x256xf32>, i32 -> vector<8x256xf32>
    %46 = vector.broadcast %29 : vector<1x256xf32> to vector<8x256xf32>
    %47 = arith.mulf %45, %46 : vector<8x256xf32>
    %c0_15 = arith.constant 0 : index
    %c0_16 = arith.constant 0 : index
    %c0_17 = arith.constant 0 : index
    %48 = vector.load %arg2[%c0_15, %c0_16, %c0_17] : memref<9x8x1xf32, #tpu.memory_space<vmem>>, vector<1x8x1xf32>
    %49 = vector.shape_cast %48 : vector<1x8x1xf32> to vector<8x1xf32>
    %50 = vector.broadcast %49 : vector<8x1xf32> to vector<8x256xf32>
    %51 = arith.mulf %47, %50 : vector<8x256xf32>
    %52 = arith.addf %41, %51 : vector<8x256xf32>
    %c1_18 = arith.constant 1 : index
    %c0_19 = arith.constant 0 : index
    %c0_20 = arith.constant 0 : index
    %53 = vector.load %arg2[%c1_18, %c0_19, %c0_20] : memref<9x8x1xf32, #tpu.memory_space<vmem>>, vector<1x8x1xf32>
    %54 = vector.shape_cast %53 : vector<1x8x1xf32> to vector<8x1xf32>
    %55 = vector.broadcast %54 : vector<8x1xf32> to vector<8x256xf32>
    %56 = arith.mulf %44, %55 : vector<8x256xf32>
    %57 = arith.addf %52, %56 : vector<8x256xf32>
    %c255_i32 = arith.constant 255 : i32
    %58 = tpu.dynamic_rotate %44 by %c255_i32 dim 1 : vector<8x256xf32>, i32 -> vector<8x256xf32>
    %59 = vector.broadcast %33 : vector<1x256xf32> to vector<8x256xf32>
    %60 = arith.mulf %58, %59 : vector<8x256xf32>
    %c2_21 = arith.constant 2 : index
    %c0_22 = arith.constant 0 : index
    %c0_23 = arith.constant 0 : index
    %61 = vector.load %arg2[%c2_21, %c0_22, %c0_23] : memref<9x8x1xf32, #tpu.memory_space<vmem>>, vector<1x8x1xf32>
    %62 = vector.shape_cast %61 : vector<1x8x1xf32> to vector<8x1xf32>
    %63 = vector.broadcast %62 : vector<8x1xf32> to vector<8x256xf32>
    %64 = arith.mulf %60, %63 : vector<8x256xf32>
    %65 = arith.addf %57, %64 : vector<8x256xf32>
    %c1_i32_24 = arith.constant 1 : i32
    %66 = tpu.dynamic_rotate %0 by %c1_i32_24 dim 1 : vector<8x256xf32>, i32 -> vector<8x256xf32>
    %67 = vector.broadcast %29 : vector<1x256xf32> to vector<8x256xf32>
    %68 = arith.mulf %66, %67 : vector<8x256xf32>
    %c3 = arith.constant 3 : index
    %c0_25 = arith.constant 0 : index
    %c0_26 = arith.constant 0 : index
    %69 = vector.load %arg2[%c3, %c0_25, %c0_26] : memref<9x8x1xf32, #tpu.memory_space<vmem>>, vector<1x8x1xf32>
    %70 = vector.shape_cast %69 : vector<1x8x1xf32> to vector<8x1xf32>
    %71 = vector.broadcast %70 : vector<8x1xf32> to vector<8x256xf32>
    %72 = arith.mulf %68, %71 : vector<8x256xf32>
    %73 = arith.addf %65, %72 : vector<8x256xf32>
    %c4 = arith.constant 4 : index
    %c0_27 = arith.constant 0 : index
    %c0_28 = arith.constant 0 : index
    %74 = vector.load %arg2[%c4, %c0_27, %c0_28] : memref<9x8x1xf32, #tpu.memory_space<vmem>>, vector<1x8x1xf32>
    %75 = vector.shape_cast %74 : vector<1x8x1xf32> to vector<8x1xf32>
    %76 = vector.broadcast %75 : vector<8x1xf32> to vector<8x256xf32>
    %77 = arith.mulf %0, %76 : vector<8x256xf32>
    %78 = arith.addf %73, %77 : vector<8x256xf32>
    %c255_i32_29 = arith.constant 255 : i32
    %79 = tpu.dynamic_rotate %0 by %c255_i32_29 dim 1 : vector<8x256xf32>, i32 -> vector<8x256xf32>
    %80 = vector.broadcast %33 : vector<1x256xf32> to vector<8x256xf32>
    %81 = arith.mulf %79, %80 : vector<8x256xf32>
    %c5 = arith.constant 5 : index
    %c0_30 = arith.constant 0 : index
    %c0_31 = arith.constant 0 : index
    %82 = vector.load %arg2[%c5, %c0_30, %c0_31] : memref<9x8x1xf32, #tpu.memory_space<vmem>>, vector<1x8x1xf32>
    %83 = vector.shape_cast %82 : vector<1x8x1xf32> to vector<8x1xf32>
    %84 = vector.broadcast %83 : vector<8x1xf32> to vector<8x256xf32>
    %85 = arith.mulf %81, %84 : vector<8x256xf32>
    %86 = arith.addf %78, %85 : vector<8x256xf32>
    %c240_i32_32 = arith.constant 240 : i32
    %87 = tpu.dynamic_rotate %0 by %c240_i32_32 dim 1 : vector<8x256xf32>, i32 -> vector<8x256xf32>
    %88 = vector.broadcast %25 : vector<1x256xf32> to vector<8x256xf32>
    %89 = arith.mulf %87, %88 : vector<8x256xf32>
    %c1_i32_33 = arith.constant 1 : i32
    %90 = tpu.dynamic_rotate %89 by %c1_i32_33 dim 1 : vector<8x256xf32>, i32 -> vector<8x256xf32>
    %91 = vector.broadcast %29 : vector<1x256xf32> to vector<8x256xf32>
    %92 = arith.mulf %90, %91 : vector<8x256xf32>
    %c6 = arith.constant 6 : index
    %c0_34 = arith.constant 0 : index
    %c0_35 = arith.constant 0 : index
    %93 = vector.load %arg2[%c6, %c0_34, %c0_35] : memref<9x8x1xf32, #tpu.memory_space<vmem>>, vector<1x8x1xf32>
    %94 = vector.shape_cast %93 : vector<1x8x1xf32> to vector<8x1xf32>
    %95 = vector.broadcast %94 : vector<8x1xf32> to vector<8x256xf32>
    %96 = arith.mulf %92, %95 : vector<8x256xf32>
    %97 = arith.addf %86, %96 : vector<8x256xf32>
    %c7 = arith.constant 7 : index
    %c0_36 = arith.constant 0 : index
    %c0_37 = arith.constant 0 : index
    %98 = vector.load %arg2[%c7, %c0_36, %c0_37] : memref<9x8x1xf32, #tpu.memory_space<vmem>>, vector<1x8x1xf32>
    %99 = vector.shape_cast %98 : vector<1x8x1xf32> to vector<8x1xf32>
    %100 = vector.broadcast %99 : vector<8x1xf32> to vector<8x256xf32>
    %101 = arith.mulf %89, %100 : vector<8x256xf32>
    %102 = arith.addf %97, %101 : vector<8x256xf32>
    %c255_i32_38 = arith.constant 255 : i32
    %103 = tpu.dynamic_rotate %89 by %c255_i32_38 dim 1 : vector<8x256xf32>, i32 -> vector<8x256xf32>
    %104 = vector.broadcast %33 : vector<1x256xf32> to vector<8x256xf32>
    %105 = arith.mulf %103, %104 : vector<8x256xf32>
    %c8 = arith.constant 8 : index
    %c0_39 = arith.constant 0 : index
    %c0_40 = arith.constant 0 : index
    %106 = vector.load %arg2[%c8, %c0_39, %c0_40] : memref<9x8x1xf32, #tpu.memory_space<vmem>>, vector<1x8x1xf32>
    %107 = vector.shape_cast %106 : vector<1x8x1xf32> to vector<8x1xf32>
    %108 = vector.broadcast %107 : vector<8x1xf32> to vector<8x256xf32>
    %109 = arith.mulf %105, %108 : vector<8x256xf32>
    %110 = arith.addf %102, %109 : vector<8x256xf32>
    %cst = arith.constant 0.000000e+00 : f32
    %111 = vector.broadcast %cst : f32 to vector<8x256xf32>
    %112 = arith.maximumf %110, %111 : vector<8x256xf32>
    %c0_41 = arith.constant 0 : index
    %c0_42 = arith.constant 0 : index
    %113 = vector.load %arg4[%c0_41, %c0_42] : memref<8x8xf32, #tpu.memory_space<vmem>>, vector<8x8xf32>
    %cst_43 = arith.constant dense<0.000000e+00> : vector<8x256xf32>
    %114 = tpu.matmul %113, %112, %cst_43 {dimension_numbers = #tpu.dot_dimension_numbers<[1], [0], [0], [1], [0, 0, 1, 1], [], []>} : vector<8x8xf32>, vector<8x256xf32>, vector<8x256xf32> -> vector<8x256xf32>
    %115 = vector.broadcast %37 : vector<8x1xf32> to vector<8x256xf32>
    %116 = arith.mulf %114, %115 : vector<8x256xf32>
    %117 = vector.broadcast %39 : vector<8x1xf32> to vector<8x256xf32>
    %118 = arith.addf %116, %117 : vector<8x256xf32>
    %cst_44 = arith.constant 0.000000e+00 : f32
    %119 = vector.broadcast %cst_44 : f32 to vector<8x256xf32>
    %120 = arith.maximumf %118, %119 : vector<8x256xf32>
    %c0_45 = arith.constant 0 : index
    %c0_46 = arith.constant 0 : index
    %c0_47 = arith.constant 0 : index
    %121 = vector.load %arg6[%c0_45, %c0_46, %c0_47] : memref<3x8x1xf32, #tpu.memory_space<vmem>>, vector<1x8x1xf32>
    %122 = vector.shape_cast %121 : vector<1x8x1xf32> to vector<8x1xf32>
    %c1_48 = arith.constant 1 : index
    %c0_49 = arith.constant 0 : index
    %c0_50 = arith.constant 0 : index
    %123 = vector.load %arg6[%c1_48, %c0_49, %c0_50] : memref<3x8x1xf32, #tpu.memory_space<vmem>>, vector<1x8x1xf32>
    %124 = vector.shape_cast %123 : vector<1x8x1xf32> to vector<8x1xf32>
    %c2_51 = arith.constant 2 : index
    %c0_52 = arith.constant 0 : index
    %c0_53 = arith.constant 0 : index
    %125 = vector.load %arg6[%c2_51, %c0_52, %c0_53] : memref<3x8x1xf32, #tpu.memory_space<vmem>>, vector<1x8x1xf32>
    %126 = vector.shape_cast %125 : vector<1x8x1xf32> to vector<8x1xf32>
    %127 = vector.shape_cast %122 : vector<8x1xf32> to vector<8x1xf32>
    %128 = vector.broadcast %127 : vector<8x1xf32> to vector<8x256xf32>
    %c16_i32_54 = arith.constant 16 : i32
    %129 = tpu.dynamic_rotate %120 by %c16_i32_54 dim 1 : vector<8x256xf32>, i32 -> vector<8x256xf32>
    %130 = vector.broadcast %21 : vector<1x256xf32> to vector<8x256xf32>
    %131 = arith.mulf %129, %130 : vector<8x256xf32>
    %c1_i32_55 = arith.constant 1 : i32
    %132 = tpu.dynamic_rotate %131 by %c1_i32_55 dim 1 : vector<8x256xf32>, i32 -> vector<8x256xf32>
    %133 = vector.broadcast %29 : vector<1x256xf32> to vector<8x256xf32>
    %134 = arith.mulf %132, %133 : vector<8x256xf32>
    %c0_56 = arith.constant 0 : index
    %c0_57 = arith.constant 0 : index
    %c0_58 = arith.constant 0 : index
    %135 = vector.load %arg5[%c0_56, %c0_57, %c0_58] : memref<9x8x1xf32, #tpu.memory_space<vmem>>, vector<1x8x1xf32>
    %136 = vector.shape_cast %135 : vector<1x8x1xf32> to vector<8x1xf32>
    %137 = vector.broadcast %136 : vector<8x1xf32> to vector<8x256xf32>
    %138 = arith.mulf %134, %137 : vector<8x256xf32>
    %139 = arith.addf %128, %138 : vector<8x256xf32>
    %c1_59 = arith.constant 1 : index
    %c0_60 = arith.constant 0 : index
    %c0_61 = arith.constant 0 : index
    %140 = vector.load %arg5[%c1_59, %c0_60, %c0_61] : memref<9x8x1xf32, #tpu.memory_space<vmem>>, vector<1x8x1xf32>
    %141 = vector.shape_cast %140 : vector<1x8x1xf32> to vector<8x1xf32>
    %142 = vector.broadcast %141 : vector<8x1xf32> to vector<8x256xf32>
    %143 = arith.mulf %131, %142 : vector<8x256xf32>
    %144 = arith.addf %139, %143 : vector<8x256xf32>
    %c255_i32_62 = arith.constant 255 : i32
    %145 = tpu.dynamic_rotate %131 by %c255_i32_62 dim 1 : vector<8x256xf32>, i32 -> vector<8x256xf32>
    %146 = vector.broadcast %33 : vector<1x256xf32> to vector<8x256xf32>
    %147 = arith.mulf %145, %146 : vector<8x256xf32>
    %c2_63 = arith.constant 2 : index
    %c0_64 = arith.constant 0 : index
    %c0_65 = arith.constant 0 : index
    %148 = vector.load %arg5[%c2_63, %c0_64, %c0_65] : memref<9x8x1xf32, #tpu.memory_space<vmem>>, vector<1x8x1xf32>
    %149 = vector.shape_cast %148 : vector<1x8x1xf32> to vector<8x1xf32>
    %150 = vector.broadcast %149 : vector<8x1xf32> to vector<8x256xf32>
    %151 = arith.mulf %147, %150 : vector<8x256xf32>
    %152 = arith.addf %144, %151 : vector<8x256xf32>
    %c1_i32_66 = arith.constant 1 : i32
    %153 = tpu.dynamic_rotate %120 by %c1_i32_66 dim 1 : vector<8x256xf32>, i32 -> vector<8x256xf32>
    %154 = vector.broadcast %29 : vector<1x256xf32> to vector<8x256xf32>
    %155 = arith.mulf %153, %154 : vector<8x256xf32>
    %c3_67 = arith.constant 3 : index
    %c0_68 = arith.constant 0 : index
    %c0_69 = arith.constant 0 : index
    %156 = vector.load %arg5[%c3_67, %c0_68, %c0_69] : memref<9x8x1xf32, #tpu.memory_space<vmem>>, vector<1x8x1xf32>
    %157 = vector.shape_cast %156 : vector<1x8x1xf32> to vector<8x1xf32>
    %158 = vector.broadcast %157 : vector<8x1xf32> to vector<8x256xf32>
    %159 = arith.mulf %155, %158 : vector<8x256xf32>
    %160 = arith.addf %152, %159 : vector<8x256xf32>
    %c4_70 = arith.constant 4 : index
    %c0_71 = arith.constant 0 : index
    %c0_72 = arith.constant 0 : index
    %161 = vector.load %arg5[%c4_70, %c0_71, %c0_72] : memref<9x8x1xf32, #tpu.memory_space<vmem>>, vector<1x8x1xf32>
    %162 = vector.shape_cast %161 : vector<1x8x1xf32> to vector<8x1xf32>
    %163 = vector.broadcast %162 : vector<8x1xf32> to vector<8x256xf32>
    %164 = arith.mulf %120, %163 : vector<8x256xf32>
    %165 = arith.addf %160, %164 : vector<8x256xf32>
    %c255_i32_73 = arith.constant 255 : i32
    %166 = tpu.dynamic_rotate %120 by %c255_i32_73 dim 1 : vector<8x256xf32>, i32 -> vector<8x256xf32>
    %167 = vector.broadcast %33 : vector<1x256xf32> to vector<8x256xf32>
    %168 = arith.mulf %166, %167 : vector<8x256xf32>
    %c5_74 = arith.constant 5 : index
    %c0_75 = arith.constant 0 : index
    %c0_76 = arith.constant 0 : index
    %169 = vector.load %arg5[%c5_74, %c0_75, %c0_76] : memref<9x8x1xf32, #tpu.memory_space<vmem>>, vector<1x8x1xf32>
    %170 = vector.shape_cast %169 : vector<1x8x1xf32> to vector<8x1xf32>
    %171 = vector.broadcast %170 : vector<8x1xf32> to vector<8x256xf32>
    %172 = arith.mulf %168, %171 : vector<8x256xf32>
    %173 = arith.addf %165, %172 : vector<8x256xf32>
    %c240_i32_77 = arith.constant 240 : i32
    %174 = tpu.dynamic_rotate %120 by %c240_i32_77 dim 1 : vector<8x256xf32>, i32 -> vector<8x256xf32>
    %175 = vector.broadcast %25 : vector<1x256xf32> to vector<8x256xf32>
    %176 = arith.mulf %174, %175 : vector<8x256xf32>
    %c1_i32_78 = arith.constant 1 : i32
    %177 = tpu.dynamic_rotate %176 by %c1_i32_78 dim 1 : vector<8x256xf32>, i32 -> vector<8x256xf32>
    %178 = vector.broadcast %29 : vector<1x256xf32> to vector<8x256xf32>
    %179 = arith.mulf %177, %178 : vector<8x256xf32>
    %c6_79 = arith.constant 6 : index
    %c0_80 = arith.constant 0 : index
    %c0_81 = arith.constant 0 : index
    %180 = vector.load %arg5[%c6_79, %c0_80, %c0_81] : memref<9x8x1xf32, #tpu.memory_space<vmem>>, vector<1x8x1xf32>
    %181 = vector.shape_cast %180 : vector<1x8x1xf32> to vector<8x1xf32>
    %182 = vector.broadcast %181 : vector<8x1xf32> to vector<8x256xf32>
    %183 = arith.mulf %179, %182 : vector<8x256xf32>
    %184 = arith.addf %173, %183 : vector<8x256xf32>
    %c7_82 = arith.constant 7 : index
    %c0_83 = arith.constant 0 : index
    %c0_84 = arith.constant 0 : index
    %185 = vector.load %arg5[%c7_82, %c0_83, %c0_84] : memref<9x8x1xf32, #tpu.memory_space<vmem>>, vector<1x8x1xf32>
    %186 = vector.shape_cast %185 : vector<1x8x1xf32> to vector<8x1xf32>
    %187 = vector.broadcast %186 : vector<8x1xf32> to vector<8x256xf32>
    %188 = arith.mulf %176, %187 : vector<8x256xf32>
    %189 = arith.addf %184, %188 : vector<8x256xf32>
    %c255_i32_85 = arith.constant 255 : i32
    %190 = tpu.dynamic_rotate %176 by %c255_i32_85 dim 1 : vector<8x256xf32>, i32 -> vector<8x256xf32>
    %191 = vector.broadcast %33 : vector<1x256xf32> to vector<8x256xf32>
    %192 = arith.mulf %190, %191 : vector<8x256xf32>
    %c8_86 = arith.constant 8 : index
    %c0_87 = arith.constant 0 : index
    %c0_88 = arith.constant 0 : index
    %193 = vector.load %arg5[%c8_86, %c0_87, %c0_88] : memref<9x8x1xf32, #tpu.memory_space<vmem>>, vector<1x8x1xf32>
    %194 = vector.shape_cast %193 : vector<1x8x1xf32> to vector<8x1xf32>
    %195 = vector.broadcast %194 : vector<8x1xf32> to vector<8x256xf32>
    %196 = arith.mulf %192, %195 : vector<8x256xf32>
    %197 = arith.addf %189, %196 : vector<8x256xf32>
    %cst_89 = arith.constant 0.000000e+00 : f32
    %198 = vector.broadcast %cst_89 : f32 to vector<8x256xf32>
    %199 = arith.maximumf %197, %198 : vector<8x256xf32>
    %c0_90 = arith.constant 0 : index
    %c0_91 = arith.constant 0 : index
    %200 = vector.load %arg7[%c0_90, %c0_91] : memref<8x8xf32, #tpu.memory_space<vmem>>, vector<8x8xf32>
    %cst_92 = arith.constant dense<0.000000e+00> : vector<8x256xf32>
    %201 = tpu.matmul %200, %199, %cst_92 {dimension_numbers = #tpu.dot_dimension_numbers<[1], [0], [0], [1], [0, 0, 1, 1], [], []>} : vector<8x8xf32>, vector<8x256xf32>, vector<8x256xf32> -> vector<8x256xf32>
    %202 = vector.broadcast %124 : vector<8x1xf32> to vector<8x256xf32>
    %203 = arith.mulf %201, %202 : vector<8x256xf32>
    %204 = vector.broadcast %126 : vector<8x1xf32> to vector<8x256xf32>
    %205 = arith.addf %203, %204 : vector<8x256xf32>
    %206 = arith.addf %205, %0 : vector<8x256xf32>
    %cst_93 = arith.constant 0.000000e+00 : f32
    %207 = vector.broadcast %cst_93 : f32 to vector<8x256xf32>
    %208 = arith.maximumf %206, %207 : vector<8x256xf32>
    %c0_94 = arith.constant 0 : index
    %c0_95 = arith.constant 0 : index
    %209 = vector.load %arg8[%c0_94, %c0_95] : memref<8x256xf32, #tpu.memory_space<vmem>>, vector<8x256xf32>
    tpu.vector_store %arg8[%c0_94, %c0_95], %208 {strides = array<i32>} : memref<8x256xf32, #tpu.memory_space<vmem>>, vector<8x256xf32>,
    return
  }
  func.func @transform_0(%arg0: i32) -> (i32, i32) {
    %c0_i32 = arith.constant 0 : i32
    %c0_i32_0 = arith.constant 0 : i32
    return %arg0, %c0_i32 : i32, i32
  }
  func.func @transform_1(%arg0: i32) -> (i32, i32, i32) {
    %c0_i32 = arith.constant 0 : i32
    %c0_i32_0 = arith.constant 0 : i32
    %c0_i32_1 = arith.constant 0 : i32
    %c0_i32_2 = arith.constant 0 : i32
    return %c0_i32, %c0_i32_0, %c0_i32_1 : i32, i32, i32
  }
  func.func @transform_2(%arg0: i32) -> (i32, i32, i32) {
    %c0_i32 = arith.constant 0 : i32
    %c0_i32_0 = arith.constant 0 : i32
    %c0_i32_1 = arith.constant 0 : i32
    %c0_i32_2 = arith.constant 0 : i32
    return %c0_i32, %c0_i32_0, %c0_i32_1 : i32, i32, i32
  }
  func.func @transform_3(%arg0: i32) -> (i32, i32) {
    %c0_i32 = arith.constant 0 : i32
    %c0_i32_0 = arith.constant 0 : i32
    %c0_i32_1 = arith.constant 0 : i32
    return %c0_i32, %c0_i32_0 : i32, i32
  }
  func.func @transform_4(%arg0: i32) -> (i32, i32, i32) {
    %c0_i32 = arith.constant 0 : i32
    %c0_i32_0 = arith.constant 0 : i32
    %c0_i32_1 = arith.constant 0 : i32
    %c0_i32_2 = arith.constant 0 : i32
    return %c0_i32, %c0_i32_0, %c0_i32_1 : i32, i32, i32
  }
  func.func @transform_5(%arg0: i32) -> (i32, i32, i32) {
    %c0_i32 = arith.constant 0 : i32
    %c0_i32_0 = arith.constant 0 : i32
    %c0_i32_1 = arith.constant 0 : i32
    %c0_i32_2 = arith.constant 0 : i32
    return %c0_i32, %c0_i32_0, %c0_i32_1 : i32, i32, i32
  }
  func.func @transform_6(%arg0: i32) -> (i32, i32) {
    %c0_i32 = arith.constant 0 : i32
    %c0_i32_0 = arith.constant 0 : i32
    %c0_i32_1 = arith.constant 0 : i32
    return %c0_i32, %c0_i32_0 : i32, i32
  }
  func.func @transform_7(%arg0: i32) -> (i32, i32) {
    %c0_i32 = arith.constant 0 : i32
    %c0_i32_0 = arith.constant 0 : i32
    return %arg0, %c0_i32 : i32, i32
  }
}

module attributes {stable_mosaic.version = 11 : i64} {
  func.func @_fused_block_kernel(%arg0: i32, %arg1: memref<8x256xf32, #tpu.memory_space<vmem>>, %arg2: memref<9x8x1xf32, #tpu.memory_space<vmem>>, %arg3: memref<3x8x1xf32, #tpu.memory_space<vmem>>, %arg4: memref<8x8xf32, #tpu.memory_space<vmem>>, %arg5: memref<9x8x1xf32, #tpu.memory_space<vmem>>, %arg6: memref<3x8x1xf32, #tpu.memory_space<vmem>>, %arg7: memref<8x8xf32, #tpu.memory_space<vmem>>, %arg8: memref<8x256xf32, #tpu.memory_space<vmem>>) attributes {dimension_semantics = [#tpu.dimension_semantics<parallel>], iteration_bounds = array<i64: 1>, scalar_prefetch = 0 : i64, scratch_operands = 0 : i64, tpu.core_type = #tpu.core_type<tc>, window_params = [{transform_indices = @transform_0, window_bounds = array<i64: 8, 256>}, {pipeline_mode = #tpu.pipeline_mode<synchronous>, transform_indices = @transform_1, window_bounds = array<i64: 9, 8, 1>}, {pipeline_mode = #tpu.pipeline_mode<synchronous>, transform_indices = @transform_2, window_bounds = array<i64: 3, 8, 1>}, {pipeline_mode = #tpu.pipeline_mode<synchronous>, transform_indices = @transform_3, window_bounds = array<i64: 8, 8>}, {pipeline_mode = #tpu.pipeline_mode<synchronous>, transform_indices = @transform_4, window_bounds = array<i64: 9, 8, 1>}, {pipeline_mode = #tpu.pipeline_mode<synchronous>, transform_indices = @transform_5, window_bounds = array<i64: 3, 8, 1>}, {pipeline_mode = #tpu.pipeline_mode<synchronous>, transform_indices = @transform_6, window_bounds = array<i64: 8, 8>}, {transform_indices = @transform_7, window_bounds = array<i64: 8, 256>}]} {
    %c0 = arith.constant 0 : index
    %c0_0 = arith.constant 0 : index
    %0 = vector.load %arg1[%c0, %c0_0] : memref<8x256xf32, #tpu.memory_space<vmem>>, vector<8x256xf32>
    %1 = tpu.iota {dimensions = array<i32: 1>} : vector<1x256xi32>
    %c16_i32 = arith.constant 16 : i32
    %c0_i32 = arith.constant 0 : i32
    %2 = arith.cmpi eq, %c16_i32, %c0_i32 : i32
    %c1_i32 = arith.constant 1 : i32
    %3 = arith.select %2, %c1_i32, %c16_i32 : i32
    %4 = vector.broadcast %3 : i32 to vector<1x256xi32>
    %5 = arith.remsi %1, %4 : vector<1x256xi32>
    %c0_i32_1 = arith.constant 0 : i32
    %6 = vector.broadcast %c0_i32_1 : i32 to vector<1x256xi32>
    %7 = arith.cmpi ne, %5, %6 : vector<1x256xi32>
    %c0_i32_2 = arith.constant 0 : i32
    %8 = vector.broadcast %c0_i32_2 : i32 to vector<1x256xi32>
    %9 = arith.cmpi slt, %5, %8 : vector<1x256xi32>
    %c0_i32_3 = arith.constant 0 : i32
    %10 = arith.cmpi slt, %3, %c0_i32_3 : i32
    %11 = vector.broadcast %10 : i1 to vector<1x256xi1>
    %12 = vector.broadcast %11 : vector<1x256xi1> to vector<1x256xi1>
    %13 = arith.xori %9, %12 : vector<1x256xi1>
    %14 = arith.andi %13, %7 : vector<1x256xi1>
    %15 = vector.broadcast %3 : i32 to vector<1x256xi32>
    %16 = arith.addi %5, %15 : vector<1x256xi32>
    %17 = arith.select %14, %16, %5 : vector<1x256xi1>, vector<1x256xi32>
    %c16_i32_4 = arith.constant 16 : i32
    %18 = vector.broadcast %c16_i32_4 : i32 to vector<1x256xi32>
    %19 = arith.cmpi sge, %1, %18 : vector<1x256xi32>
    %20 = arith.extui %19 : vector<1x256xi1> to vector<1x256xi32>
    %21 = arith.sitofp %20 : vector<1x256xi32> to vector<1x256xf32>
    %c240_i32 = arith.constant 240 : i32
    %22 = vector.broadcast %c240_i32 : i32 to vector<1x256xi32>
    %23 = arith.cmpi slt, %1, %22 : vector<1x256xi32>
    %24 = arith.extui %23 : vector<1x256xi1> to vector<1x256xi32>
    %25 = arith.sitofp %24 : vector<1x256xi32> to vector<1x256xf32>
    %c1_i32_5 = arith.constant 1 : i32
    %26 = vector.broadcast %c1_i32_5 : i32 to vector<1x256xi32>
    %27 = arith.cmpi sge, %17, %26 : vector<1x256xi32>
    %28 = arith.extui %27 : vector<1x256xi1> to vector<1x256xi32>
    %29 = arith.sitofp %28 : vector<1x256xi32> to vector<1x256xf32>
    %c15_i32 = arith.constant 15 : i32
    %30 = vector.broadcast %c15_i32 : i32 to vector<1x256xi32>
    %31 = arith.cmpi slt, %17, %30 : vector<1x256xi32>
    %32 = arith.extui %31 : vector<1x256xi1> to vector<1x256xi32>
    %33 = arith.sitofp %32 : vector<1x256xi32> to vector<1x256xf32>
    %c0_6 = arith.constant 0 : index
    %c0_7 = arith.constant 0 : index
    %c0_8 = arith.constant 0 : index
    %34 = vector.load %arg3[%c0_6, %c0_7, %c0_8] : memref<3x8x1xf32, #tpu.memory_space<vmem>>, vector<1x8x1xf32>
    %35 = vector.shape_cast %34 : vector<1x8x1xf32> to vector<8x1xf32>
    %c1 = arith.constant 1 : index
    %c0_9 = arith.constant 0 : index
    %c0_10 = arith.constant 0 : index
    %36 = vector.load %arg3[%c1, %c0_9, %c0_10] : memref<3x8x1xf32, #tpu.memory_space<vmem>>, vector<1x8x1xf32>
    %37 = vector.shape_cast %36 : vector<1x8x1xf32> to vector<8x1xf32>
    %c2 = arith.constant 2 : index
    %c0_11 = arith.constant 0 : index
    %c0_12 = arith.constant 0 : index
    %38 = vector.load %arg3[%c2, %c0_11, %c0_12] : memref<3x8x1xf32, #tpu.memory_space<vmem>>, vector<1x8x1xf32>
    %39 = vector.shape_cast %38 : vector<1x8x1xf32> to vector<8x1xf32>
    %40 = vector.shape_cast %35 : vector<8x1xf32> to vector<8x1xf32>
    %41 = vector.broadcast %40 : vector<8x1xf32> to vector<8x256xf32>
    %c16_i32_13 = arith.constant 16 : i32
    %42 = tpu.dynamic_rotate %0 by %c16_i32_13 dim 1 : vector<8x256xf32>, i32 -> vector<8x256xf32>
    %43 = vector.broadcast %21 : vector<1x256xf32> to vector<8x256xf32>
    %44 = arith.mulf %42, %43 : vector<8x256xf32>
    %c1_i32_14 = arith.constant 1 : i32
    %45 = tpu.dynamic_rotate %44 by %c1_i32_14 dim 1 : vector<8x256xf32>, i32 -> vector<8x256xf32>
    %46 = vector.broadcast %29 : vector<1x256xf32> to vector<8x256xf32>
    %47 = arith.mulf %45, %46 : vector<8x256xf32>
    %c0_15 = arith.constant 0 : index
    %c0_16 = arith.constant 0 : index
    %c0_17 = arith.constant 0 : index
    %48 = vector.load %arg2[%c0_15, %c0_16, %c0_17] : memref<9x8x1xf32, #tpu.memory_space<vmem>>, vector<1x8x1xf32>
    %49 = vector.shape_cast %48 : vector<1x8x1xf32> to vector<8x1xf32>
    %50 = vector.broadcast %49 : vector<8x1xf32> to vector<8x256xf32>
    %51 = arith.mulf %47, %50 : vector<8x256xf32>
    %52 = arith.addf %41, %51 : vector<8x256xf32>
    %c1_18 = arith.constant 1 : index
    %c0_19 = arith.constant 0 : index
    %c0_20 = arith.constant 0 : index
    %53 = vector.load %arg2[%c1_18, %c0_19, %c0_20] : memref<9x8x1xf32, #tpu.memory_space<vmem>>, vector<1x8x1xf32>
    %54 = vector.shape_cast %53 : vector<1x8x1xf32> to vector<8x1xf32>
    %55 = vector.broadcast %54 : vector<8x1xf32> to vector<8x256xf32>
    %56 = arith.mulf %44, %55 : vector<8x256xf32>
    %57 = arith.addf %52, %56 : vector<8x256xf32>
    %c255_i32 = arith.constant 255 : i32
    %58 = tpu.dynamic_rotate %44 by %c255_i32 dim 1 : vector<8x256xf32>, i32 -> vector<8x256xf32>
    %59 = vector.broadcast %33 : vector<1x256xf32> to vector<8x256xf32>
    %60 = arith.mulf %58, %59 : vector<8x256xf32>
    %c2_21 = arith.constant 2 : index
    %c0_22 = arith.constant 0 : index
    %c0_23 = arith.constant 0 : index
    %61 = vector.load %arg2[%c2_21, %c0_22, %c0_23] : memref<9x8x1xf32, #tpu.memory_space<vmem>>, vector<1x8x1xf32>
    %62 = vector.shape_cast %61 : vector<1x8x1xf32> to vector<8x1xf32>
    %63 = vector.broadcast %62 : vector<8x1xf32> to vector<8x256xf32>
    %64 = arith.mulf %60, %63 : vector<8x256xf32>
    %65 = arith.addf %57, %64 : vector<8x256xf32>
    %c1_i32_24 = arith.constant 1 : i32
    %66 = tpu.dynamic_rotate %0 by %c1_i32_24 dim 1 : vector<8x256xf32>, i32 -> vector<8x256xf32>
    %67 = vector.broadcast %29 : vector<1x256xf32> to vector<8x256xf32>
    %68 = arith.mulf %66, %67 : vector<8x256xf32>
    %c3 = arith.constant 3 : index
    %c0_25 = arith.constant 0 : index
    %c0_26 = arith.constant 0 : index
    %69 = vector.load %arg2[%c3, %c0_25, %c0_26] : memref<9x8x1xf32, #tpu.memory_space<vmem>>, vector<1x8x1xf32>
    %70 = vector.shape_cast %69 : vector<1x8x1xf32> to vector<8x1xf32>
    %71 = vector.broadcast %70 : vector<8x1xf32> to vector<8x256xf32>
    %72 = arith.mulf %68, %71 : vector<8x256xf32>
    %73 = arith.addf %65, %72 : vector<8x256xf32>
    %c4 = arith.constant 4 : index
    %c0_27 = arith.constant 0 : index
    %c0_28 = arith.constant 0 : index
    %74 = vector.load %arg2[%c4, %c0_27, %c0_28] : memref<9x8x1xf32, #tpu.memory_space<vmem>>, vector<1x8x1xf32>
    %75 = vector.shape_cast %74 : vector<1x8x1xf32> to vector<8x1xf32>
    %76 = vector.broadcast %75 : vector<8x1xf32> to vector<8x256xf32>
    %77 = arith.mulf %0, %76 : vector<8x256xf32>
    %78 = arith.addf %73, %77 : vector<8x256xf32>
    %c255_i32_29 = arith.constant 255 : i32
    %79 = tpu.dynamic_rotate %0 by %c255_i32_29 dim 1 : vector<8x256xf32>, i32 -> vector<8x256xf32>
    %80 = vector.broadcast %33 : vector<1x256xf32> to vector<8x256xf32>
    %81 = arith.mulf %79, %80 : vector<8x256xf32>
    %c5 = arith.constant 5 : index
    %c0_30 = arith.constant 0 : index
    %c0_31 = arith.constant 0 : index
    %82 = vector.load %arg2[%c5, %c0_30, %c0_31] : memref<9x8x1xf32, #tpu.memory_space<vmem>>, vector<1x8x1xf32>
    %83 = vector.shape_cast %82 : vector<1x8x1xf32> to vector<8x1xf32>
    %84 = vector.broadcast %83 : vector<8x1xf32> to vector<8x256xf32>
    %85 = arith.mulf %81, %84 : vector<8x256xf32>
    %86 = arith.addf %78, %85 : vector<8x256xf32>
    %c240_i32_32 = arith.constant 240 : i32
    %87 = tpu.dynamic_rotate %0 by %c240_i32_32 dim 1 : vector<8x256xf32>, i32 -> vector<8x256xf32>
    %88 = vector.broadcast %25 : vector<1x256xf32> to vector<8x256xf32>
    %89 = arith.mulf %87, %88 : vector<8x256xf32>
    %c1_i32_33 = arith.constant 1 : i32
    %90 = tpu.dynamic_rotate %89 by %c1_i32_33 dim 1 : vector<8x256xf32>, i32 -> vector<8x256xf32>
    %91 = vector.broadcast %29 : vector<1x256xf32> to vector<8x256xf32>
    %92 = arith.mulf %90, %91 : vector<8x256xf32>
    %c6 = arith.constant 6 : index
    %c0_34 = arith.constant 0 : index
    %c0_35 = arith.constant 0 : index
    %93 = vector.load %arg2[%c6, %c0_34, %c0_35] : memref<9x8x1xf32, #tpu.memory_space<vmem>>, vector<1x8x1xf32>
    %94 = vector.shape_cast %93 : vector<1x8x1xf32> to vector<8x1xf32>
    %95 = vector.broadcast %94 : vector<8x1xf32> to vector<8x256xf32>
    %96 = arith.mulf %92, %95 : vector<8x256xf32>
    %97 = arith.addf %86, %96 : vector<8x256xf32>
    %c7 = arith.constant 7 : index
    %c0_36 = arith.constant 0 : index
    %c0_37 = arith.constant 0 : index
    %98 = vector.load %arg2[%c7, %c0_36, %c0_37] : memref<9x8x1xf32, #tpu.memory_space<vmem>>, vector<1x8x1xf32>
    %99 = vector.shape_cast %98 : vector<1x8x1xf32> to vector<8x1xf32>
    %100 = vector.broadcast %99 : vector<8x1xf32> to vector<8x256xf32>
    %101 = arith.mulf %89, %100 : vector<8x256xf32>
    %102 = arith.addf %97, %101 : vector<8x256xf32>
    %c255_i32_38 = arith.constant 255 : i32
    %103 = tpu.dynamic_rotate %89 by %c255_i32_38 dim 1 : vector<8x256xf32>, i32 -> vector<8x256xf32>
    %104 = vector.broadcast %33 : vector<1x256xf32> to vector<8x256xf32>
    %105 = arith.mulf %103, %104 : vector<8x256xf32>
    %c8 = arith.constant 8 : index
    %c0_39 = arith.constant 0 : index
    %c0_40 = arith.constant 0 : index
    %106 = vector.load %arg2[%c8, %c0_39, %c0_40] : memref<9x8x1xf32, #tpu.memory_space<vmem>>, vector<1x8x1xf32>
    %107 = vector.shape_cast %106 : vector<1x8x1xf32> to vector<8x1xf32>
    %108 = vector.broadcast %107 : vector<8x1xf32> to vector<8x256xf32>
    %109 = arith.mulf %105, %108 : vector<8x256xf32>
    %110 = arith.addf %102, %109 : vector<8x256xf32>
    %cst = arith.constant 0.000000e+00 : f32
    %111 = vector.broadcast %cst : f32 to vector<8x256xf32>
    %112 = arith.maximumf %110, %111 : vector<8x256xf32>
    %c0_41 = arith.constant 0 : index
    %c0_42 = arith.constant 0 : index
    %113 = vector.load %arg4[%c0_41, %c0_42] : memref<8x8xf32, #tpu.memory_space<vmem>>, vector<8x8xf32>
    %cst_43 = arith.constant dense<0.000000e+00> : vector<8x256xf32>
    %114 = tpu.matmul %113, %112, %cst_43 {dimension_numbers = #tpu.dot_dimension_numbers<[1], [0], [0], [1], [0, 0, 1, 1], [], []>} : vector<8x8xf32>, vector<8x256xf32>, vector<8x256xf32> -> vector<8x256xf32>
    %115 = vector.broadcast %37 : vector<8x1xf32> to vector<8x256xf32>
    %116 = arith.mulf %114, %115 : vector<8x256xf32>
    %117 = vector.broadcast %39 : vector<8x1xf32> to vector<8x256xf32>
    %118 = arith.addf %116, %117 : vector<8x256xf32>
    %cst_44 = arith.constant 0.000000e+00 : f32
    %119 = vector.broadcast %cst_44 : f32 to vector<8x256xf32>
    %120 = arith.maximumf %118, %119 : vector<8x256xf32>
    %c0_45 = arith.constant 0 : index
    %c0_46 = arith.constant 0 : index
    %c0_47 = arith.constant 0 : index
    %121 = vector.load %arg6[%c0_45, %c0_46, %c0_47] : memref<3x8x1xf32, #tpu.memory_space<vmem>>, vector<1x8x1xf32>
    %122 = vector.shape_cast %121 : vector<1x8x1xf32> to vector<8x1xf32>
    %c1_48 = arith.constant 1 : index
    %c0_49 = arith.constant 0 : index
    %c0_50 = arith.constant 0 : index
    %123 = vector.load %arg6[%c1_48, %c0_49, %c0_50] : memref<3x8x1xf32, #tpu.memory_space<vmem>>, vector<1x8x1xf32>
    %124 = vector.shape_cast %123 : vector<1x8x1xf32> to vector<8x1xf32>
    %c2_51 = arith.constant 2 : index
    %c0_52 = arith.constant 0 : index
    %c0_53 = arith.constant 0 : index
    %125 = vector.load %arg6[%c2_51, %c0_52, %c0_53] : memref<3x8x1xf32, #tpu.memory_space<vmem>>, vector<1x8x1xf32>
    %126 = vector.shape_cast %125 : vector<1x8x1xf32> to vector<8x1xf32>
    %127 = vector.shape_cast %122 : vector<8x1xf32> to vector<8x1xf32>
    %128 = vector.broadcast %127 : vector<8x1xf32> to vector<8x256xf32>
    %c16_i32_54 = arith.constant 16 : i32
    %129 = tpu.dynamic_rotate %120 by %c16_i32_54 dim 1 : vector<8x256xf32>, i32 -> vector<8x256xf32>
    %130 = vector.broadcast %21 : vector<1x256xf32> to vector<8x256xf32>
    %131 = arith.mulf %129, %130 : vector<8x256xf32>
    %c1_i32_55 = arith.constant 1 : i32
    %132 = tpu.dynamic_rotate %131 by %c1_i32_55 dim 1 : vector<8x256xf32>, i32 -> vector<8x256xf32>
    %133 = vector.broadcast %29 : vector<1x256xf32> to vector<8x256xf32>
    %134 = arith.mulf %132, %133 : vector<8x256xf32>
    %c0_56 = arith.constant 0 : index
    %c0_57 = arith.constant 0 : index
    %c0_58 = arith.constant 0 : index
    %135 = vector.load %arg5[%c0_56, %c0_57, %c0_58] : memref<9x8x1xf32, #tpu.memory_space<vmem>>, vector<1x8x1xf32>
    %136 = vector.shape_cast %135 : vector<1x8x1xf32> to vector<8x1xf32>
    %137 = vector.broadcast %136 : vector<8x1xf32> to vector<8x256xf32>
    %138 = arith.mulf %134, %137 : vector<8x256xf32>
    %139 = arith.addf %128, %138 : vector<8x256xf32>
    %c1_59 = arith.constant 1 : index
    %c0_60 = arith.constant 0 : index
    %c0_61 = arith.constant 0 : index
    %140 = vector.load %arg5[%c1_59, %c0_60, %c0_61] : memref<9x8x1xf32, #tpu.memory_space<vmem>>, vector<1x8x1xf32>
    %141 = vector.shape_cast %140 : vector<1x8x1xf32> to vector<8x1xf32>
    %142 = vector.broadcast %141 : vector<8x1xf32> to vector<8x256xf32>
    %143 = arith.mulf %131, %142 : vector<8x256xf32>
    %144 = arith.addf %139, %143 : vector<8x256xf32>
    %c255_i32_62 = arith.constant 255 : i32
    %145 = tpu.dynamic_rotate %131 by %c255_i32_62 dim 1 : vector<8x256xf32>, i32 -> vector<8x256xf32>
    %146 = vector.broadcast %33 : vector<1x256xf32> to vector<8x256xf32>
    %147 = arith.mulf %145, %146 : vector<8x256xf32>
    %c2_63 = arith.constant 2 : index
    %c0_64 = arith.constant 0 : index
    %c0_65 = arith.constant 0 : index
    %148 = vector.load %arg5[%c2_63, %c0_64, %c0_65] : memref<9x8x1xf32, #tpu.memory_space<vmem>>, vector<1x8x1xf32>
    %149 = vector.shape_cast %148 : vector<1x8x1xf32> to vector<8x1xf32>
    %150 = vector.broadcast %149 : vector<8x1xf32> to vector<8x256xf32>
    %151 = arith.mulf %147, %150 : vector<8x256xf32>
    %152 = arith.addf %144, %151 : vector<8x256xf32>
    %c1_i32_66 = arith.constant 1 : i32
    %153 = tpu.dynamic_rotate %120 by %c1_i32_66 dim 1 : vector<8x256xf32>, i32 -> vector<8x256xf32>
    %154 = vector.broadcast %29 : vector<1x256xf32> to vector<8x256xf32>
    %155 = arith.mulf %153, %154 : vector<8x256xf32>
    %c3_67 = arith.constant 3 : index
    %c0_68 = arith.constant 0 : index
    %c0_69 = arith.constant 0 : index
    %156 = vector.load %arg5[%c3_67, %c0_68, %c0_69] : memref<9x8x1xf32, #tpu.memory_space<vmem>>, vector<1x8x1xf32>
    %157 = vector.shape_cast %156 : vector<1x8x1xf32> to vector<8x1xf32>
    %158 = vector.broadcast %157 : vector<8x1xf32> to vector<8x256xf32>
    %159 = arith.mulf %155, %158 : vector<8x256xf32>
    %160 = arith.addf %152, %159 : vector<8x256xf32>
    %c4_70 = arith.constant 4 : index
    %c0_71 = arith.constant 0 : index
    %c0_72 = arith.constant 0 : index
    %161 = vector.load %arg5[%c4_70, %c0_71, %c0_72] : memref<9x8x1xf32, #tpu.memory_space<vmem>>, vector<1x8x1xf32>
    %162 = vector.shape_cast %161 : vector<1x8x1xf32> to vector<8x1xf32>
    %163 = vector.broadcast %162 : vector<8x1xf32> to vector<8x256xf32>
    %164 = arith.mulf %120, %163 : vector<8x256xf32>
    %165 = arith.addf %160, %164 : vector<8x256xf32>
    %c255_i32_73 = arith.constant 255 : i32
    %166 = tpu.dynamic_rotate %120 by %c255_i32_73 dim 1 : vector<8x256xf32>, i32 -> vector<8x256xf32>
    %167 = vector.broadcast %33 : vector<1x256xf32> to vector<8x256xf32>
    %168 = arith.mulf %166, %167 : vector<8x256xf32>
    %c5_74 = arith.constant 5 : index
    %c0_75 = arith.constant 0 : index
    %c0_76 = arith.constant 0 : index
    %169 = vector.load %arg5[%c5_74, %c0_75, %c0_76] : memref<9x8x1xf32, #tpu.memory_space<vmem>>, vector<1x8x1xf32>
    %170 = vector.shape_cast %169 : vector<1x8x1xf32> to vector<8x1xf32>
    %171 = vector.broadcast %170 : vector<8x1xf32> to vector<8x256xf32>
    %172 = arith.mulf %168, %171 : vector<8x256xf32>
    %173 = arith.addf %165, %172 : vector<8x256xf32>
    %c240_i32_77 = arith.constant 240 : i32
    %174 = tpu.dynamic_rotate %120 by %c240_i32_77 dim 1 : vector<8x256xf32>, i32 -> vector<8x256xf32>
    %175 = vector.broadcast %25 : vector<1x256xf32> to vector<8x256xf32>
    %176 = arith.mulf %174, %175 : vector<8x256xf32>
    %c1_i32_78 = arith.constant 1 : i32
    %177 = tpu.dynamic_rotate %176 by %c1_i32_78 dim 1 : vector<8x256xf32>, i32 -> vector<8x256xf32>
    %178 = vector.broadcast %29 : vector<1x256xf32> to vector<8x256xf32>
    %179 = arith.mulf %177, %178 : vector<8x256xf32>
    %c6_79 = arith.constant 6 : index
    %c0_80 = arith.constant 0 : index
    %c0_81 = arith.constant 0 : index
    %180 = vector.load %arg5[%c6_79, %c0_80, %c0_81] : memref<9x8x1xf32, #tpu.memory_space<vmem>>, vector<1x8x1xf32>
    %181 = vector.shape_cast %180 : vector<1x8x1xf32> to vector<8x1xf32>
    %182 = vector.broadcast %181 : vector<8x1xf32> to vector<8x256xf32>
    %183 = arith.mulf %179, %182 : vector<8x256xf32>
    %184 = arith.addf %173, %183 : vector<8x256xf32>
    %c7_82 = arith.constant 7 : index
    %c0_83 = arith.constant 0 : index
    %c0_84 = arith.constant 0 : index
    %185 = vector.load %arg5[%c7_82, %c0_83, %c0_84] : memref<9x8x1xf32, #tpu.memory_space<vmem>>, vector<1x8x1xf32>
    %186 = vector.shape_cast %185 : vector<1x8x1xf32> to vector<8x1xf32>
    %187 = vector.broadcast %186 : vector<8x1xf32> to vector<8x256xf32>
    %188 = arith.mulf %176, %187 : vector<8x256xf32>
    %189 = arith.addf %184, %188 : vector<8x256xf32>
    %c255_i32_85 = arith.constant 255 : i32
    %190 = tpu.dynamic_rotate %176 by %c255_i32_85 dim 1 : vector<8x256xf32>, i32 -> vector<8x256xf32>
    %191 = vector.broadcast %33 : vector<1x256xf32> to vector<8x256xf32>
    %192 = arith.mulf %190, %191 : vector<8x256xf32>
    %c8_86 = arith.constant 8 : index
    %c0_87 = arith.constant 0 : index
    %c0_88 = arith.constant 0 : index
    %193 = vector.load %arg5[%c8_86, %c0_87, %c0_88] : memref<9x8x1xf32, #tpu.memory_space<vmem>>, vector<1x8x1xf32>
    %194 = vector.shape_cast %193 : vector<1x8x1xf32> to vector<8x1xf32>
    %195 = vector.broadcast %194 : vector<8x1xf32> to vector<8x256xf32>
    %196 = arith.mulf %192, %195 : vector<8x256xf32>
    %197 = arith.addf %189, %196 : vector<8x256xf32>
    %cst_89 = arith.constant 0.000000e+00 : f32
    %198 = vector.broadcast %cst_89 : f32 to vector<8x256xf32>
    %199 = arith.maximumf %197, %198 : vector<8x256xf32>
    %c0_90 = arith.constant 0 : index
    %c0_91 = arith.constant 0 : index
    %200 = vector.load %arg7[%c0_90, %c0_91] : memref<8x8xf32, #tpu.memory_space<vmem>>, vector<8x8xf32>
    %cst_92 = arith.constant dense<0.000000e+00> : vector<8x256xf32>
    %201 = tpu.matmul %200, %199, %cst_92 {dimension_numbers = #tpu.dot_dimension_numbers<[1], [0], [0], [1], [0, 0, 1, 1], [], []>} : vector<8x8xf32>, vector<8x256xf32>, vector<8x256xf32> -> vector<8x256xf32>
    %202 = vector.broadcast %124 : vector<8x1xf32> to vector<8x256xf32>
    %203 = arith.mulf %201, %202 : vector<8x256xf32>
    %204 = vector.broadcast %126 : vector<8x1xf32> to vector<8x256xf32>
    %205 = arith.addf %203, %204 : vector<8x256xf32>
    %206 = arith.addf %205, %0 : vector<8x256xf32>
    %cst_93 = arith.constant 0.000000e+00 : f32
    %207 = vector.broadcast %cst_93 : f32 to vector<8x256xf32>
    %208 = arith.maximumf %206, %207 : vector<8x256xf32>
    %c0_94 = arith.constant 0 : index
    %c0_95 = arith.constant 0 : index
    %209 = vector.load %arg8[%c0_94, %c0_95] : memref<8x256xf32, #tpu.memory_space<vmem>>, vector<8x256xf32>
    tpu.vector_store %arg8[%c0_94, %c0_95], %208 {strides = array<i32>} : memref<8x256xf32, #tpu.memory_space<vmem>>, vector<8x256xf32>,
    return
  }
  func.func @transform_0(%arg0: i32) -> (i32, i32) {
    %c0_i32 = arith.constant 0 : i32
    %c0_i32_0 = arith.constant 0 : i32
    return %arg0, %c0_i32 : i32, i32
  }
  func.func @transform_1(%arg0: i32) -> (i32, i32, i32) {
    %c0_i32 = arith.constant 0 : i32
    %c0_i32_0 = arith.constant 0 : i32
    %c0_i32_1 = arith.constant 0 : i32
    %c0_i32_2 = arith.constant 0 : i32
    return %c0_i32, %c0_i32_0, %c0_i32_1 : i32, i32, i32
  }
  func.func @transform_2(%arg0: i32) -> (i32, i32, i32) {
    %c0_i32 = arith.constant 0 : i32
    %c0_i32_0 = arith.constant 0 : i32
    %c0_i32_1 = arith.constant 0 : i32
    %c0_i32_2 = arith.constant 0 : i32
    return %c0_i32, %c0_i32_0, %c0_i32_1 : i32, i32, i32
  }
  func.func @transform_3(%arg0: i32) -> (i32, i32) {
    %c0_i32 = arith.constant 0 : i32
    %c0_i32_0 = arith.constant 0 : i32
    %c0_i32_1 = arith.constant 0 : i32
    return %c0_i32, %c0_i32_0 : i32, i32
  }
  func.func @transform_4(%arg0: i32) -> (i32, i32, i32) {
    %c0_i32 = arith.constant 0 : i32
    %c0_i32_0 = arith.constant 0 : i32
    %c0_i32_1 = arith.constant 0 : i32
    %c0_i32_2 = arith.constant 0 : i32
    return %c0_i32, %c0_i32_0, %c0_i32_1 : i32, i32, i32
  }
  func.func @transform_5(%arg0: i32) -> (i32, i32, i32) {
    %c0_i32 = arith.constant 0 : i32
    %c0_i32_0 = arith.constant 0 : i32
    %c0_i32_1 = arith.constant 0 : i32
    %c0_i32_2 = arith.constant 0 : i32
    return %c0_i32, %c0_i32_0, %c0_i32_1 : i32, i32, i32
  }
  func.func @transform_6(%arg0: i32) -> (i32, i32) {
    %c0_i32 = arith.constant 0 : i32
    %c0_i32_0 = arith.constant 0 : i32
    %c0_i32_1 = arith.constant 0 : i32
    return %c0_i32, %c0_i32_0 : i32, i32
  }
  func.func @transform_7(%arg0: i32) -> (i32, i32) {
    %c0_i32 = arith.constant 0 : i32
    %c0_i32_0 = arith.constant 0 : i32
    return %arg0, %c0_i32 : i32, i32
  }
}

</mosaic_0001>

<llo_original>
// kernel: tpu_custom_call.1
$region0: #{tpu_custom_call.1}
  #allocation0 [shape = 'u32[]', space=smem, size = 0x4, offset = 0x4, fixed_abs, tag = 'smem constant byte address 0x4 - core index']
  #allocation1 [shape = 'u32[144,128]{1,0:T(1,128)}', space=vmem, size = 0x12000, scoped, tag = 'internal scratch']
  %s0 = inlined_call_operand.vmem [shape: f32[8,256], index: 0, kind: input, shape index: {}]
  %s1 = inlined_call_operand.vmem [shape: f32[9,8,1], index: 1, kind: input, shape index: {}]
  %s2 = inlined_call_operand.vmem [shape: f32[3,8,1], index: 2, kind: input, shape index: {}]
  %s3 = inlined_call_operand.vmem [shape: f32[8,8], index: 3, kind: input, shape index: {}]
  %s4 = inlined_call_operand.vmem [shape: f32[9,8,1], index: 4, kind: input, shape index: {}]
  %s5 = inlined_call_operand.vmem [shape: f32[3,8,1], index: 5, kind: input, shape index: {}]
  %s6 = inlined_call_operand.vmem [shape: f32[8,8], index: 6, kind: input, shape index: {}]
  %s7 = inlined_call_operand.hbm [shape: f32[8,256], index: 7, kind: output, shape index: {}]
  %s8 = sld [smem:[#allocation0]]
  $region38: #{tpu_custom_call.1} parent=0
    _
  %s10 = ssub.s32 1, %s8
  %s11 = scalar_select 0, %s10, %s8
  $region1: #{tpu_custom_call.1} parent=0
    #allocation2 [shape = 'u8[8192]{0}', space=vmem, size = 0x2000, scoped, tag = 'output window, operand 0, single buffered']
    #allocation3 [shape = 's32[1]{0}', space=sflag, size = 0x4, scoped, tag = 'scoped memory for tpu_custom_call.1']
    %12 = vsyncpa [#allocation3], 0
    // Predicated region
    $region2: #{tpu_custom_call.1} parent=1 // pred_check
      _
    $region3: #{tpu_custom_call.1} parent=1 // pred_check_branch
      %14 = sbr.rel (0) target = $region5
    $region4: #{tpu_custom_call.1} parent=1 // pred_region
      _
    $region5: #{tpu_custom_call.1} parent=1 // pred_fallthru
      _
    // Predicated region
    $region6: #{tpu_custom_call.1} parent=1 // pred_check
      _
    $region7: #{tpu_custom_call.1} parent=1 // pred_check_branch
      %16 = sbr.rel (0) target = $region9
    $region8: #{tpu_custom_call.1} parent=1 // pred_region
      _
    $region9: #{tpu_custom_call.1} parent=1 // pred_fallthru
      _
    // Predicated region
    $region10: #{tpu_custom_call.1} parent=1 // pred_check
      _
    $region11: #{tpu_custom_call.1} parent=1 // pred_check_branch
      %18 = sbr.rel (0) target = $region13
    $region12: #{tpu_custom_call.1} parent=1 // pred_region
      _
    $region13: #{tpu_custom_call.1} parent=1 // pred_fallthru
      _
    // Predicated region
    $region14: #{tpu_custom_call.1} parent=1 // pred_check
      _
    $region15: #{tpu_custom_call.1} parent=1 // pred_check_branch
      %20 = sbr.rel (0) target = $region17
    $region16: #{tpu_custom_call.1} parent=1 // pred_region
      _
    $region17: #{tpu_custom_call.1} parent=1 // pred_fallthru
      _
    // Predicated region
    $region18: #{tpu_custom_call.1} parent=1 // pred_check
      _
    $region19: #{tpu_custom_call.1} parent=1 // pred_check_branch
      %22 = sbr.rel (0) target = $region21
    $region20: #{tpu_custom_call.1} parent=1 // pred_region
      _
    $region21: #{tpu_custom_call.1} parent=1 // pred_fallthru
      _
    // Predicated region
    $region22: #{tpu_custom_call.1} parent=1 // pred_check
      _
    $region23: #{tpu_custom_call.1} parent=1 // pred_check_branch
      %24 = sbr.rel (0) target = $region25
    $region24: #{tpu_custom_call.1} parent=1 // pred_region
      _
    $region25: #{tpu_custom_call.1} parent=1 // pred_fallthru
      _
    // Predicated region
    $region26: #{tpu_custom_call.1} parent=1 // pred_check
      _
    $region27: #{tpu_custom_call.1} parent=1 // pred_check_branch
      %26 = sbr.rel (0) target = $region29
    $region28: #{tpu_custom_call.1} parent=1 // pred_region
      _
    $region29: #{tpu_custom_call.1} parent=1 // pred_fallthru
      _
    %v27 = vld [vmem:[%s0] sm:$0xff]
    %v28 = vld [vmem:[%s0 + $0x8] sm:$0xff]
    %v29 = vlaneseq
    %v30 = vand.u32 %v29, 127
    %v31 = vadd.s32 %v30, 128
    %vm32 = vcmp.lt.s32.totalorder %v30, 0
    %v33 = vsub.s32 0, %v30
    %v34 = vsel %vm32, %v33, %v30
    %v35 = vshrl.u32 %v34, 4
    %v36 = vand.u32 %v34, 15
    %v37 = vsub.s32 0, %v36
    %v38 = vsel %vm32, %v37, %v36
    %vm39 = vcmp.lt.s32.totalorder %v31, 0
    %v40 = vsub.s32 0, %v31
    %v41 = vsel %vm39, %v40, %v31
    %v42 = vshrl.u32 %v41, 4
    %v43 = vand.u32 %v41, 15
    %v44 = vsub.s32 0, %v43
    %v45 = vsel %vm39, %v44, %v43
    %vm46 = vcmp.ne.s32.totalorder %v38, 0
    %vm47 = vcmp.ne.s32.totalorder %v45, 0
    %vm48 = vcmp.lt.s32.totalorder %v38, 0
    %vm49 = vcmp.lt.s32.totalorder %v45, 0
    %vm50 = vmand %vm48, %vm46
    %vm51 = vmand %vm49, %vm47
    %v52 = vadd.s32 %v38, 16
    %v53 = vadd.s32 %v45, 16
    %v54 = vsel %vm50, %v52, %v38
    %v55 = vsel %vm51, %v53, %v45
    %vm56 = vcmp.ge.s32.totalorder %v30, 16
    %vm57 = vcmp.ge.s32.totalorder %v31, 16
    %v58 = vsel %vm56, 1, 0
    %v59 = vsel %vm57, 1, 0
    %v60 = vcvt.s32.f32 %v58
    %v61 = vcvt.s32.f32 %v59
    %vm62 = vcmp.lt.s32.totalorder %v30, 240
    %vm63 = vcmp.lt.s32.totalorder %v31, 240
    %v64 = vsel %vm62, 1, 0
    %v65 = vsel %vm63, 1, 0
    %v66 = vcvt.s32.f32 %v64
    %v67 = vcvt.s32.f32 %v65
    %vm68 = vcmp.ge.s32.totalorder %v54, 1
    %vm69 = vcmp.ge.s32.totalorder %v55, 1
    %v70 = vsel %vm68, 1, 0
    %v71 = vsel %vm69, 1, 0
    %v72 = vcvt.s32.f32 %v70
    %v73 = vcvt.s32.f32 %v71
    %vm74 = vcmp.lt.s32.totalorder %v54, 15
    %vm75 = vcmp.lt.s32.totalorder %v55, 15
    %v76 = vsel %vm74, 1, 0
    %v77 = vsel %vm75, 1, 0
    %v78 = vcvt.s32.f32 %v76
    %v79 = vcvt.s32.f32 %v77
    %v80 = vld [vmem:[%s2] sm:$0xff]
    %s81 = scalar_lea.vmem %s2, 8
    %v82 = vld [vmem:[%s81] sm:$0xff]
    %s83 = scalar_lea.vmem %s2, 16
    %v84 = vld [vmem:[%s83] sm:$0xff]
    %86 = vset.pattern.permute.xlu0 0
    %87 = vperm.xlu0 %86, %v80
    %v88 = vpop.permute.xlu0 %87
    %90 = vrot.lane.b32.xlu0 %v27, 16
    %v91 = vpop.permute.xlu0 %90
    %92 = vrot.lane.b32.xlu0 %v28, 16
    %v93 = vpop.permute.xlu0 %92
    %vm94 = vcmp.lt.s32.totalorder %v30, 16
    %v95 = vsel %vm94, %v91, %v93
    %v96 = vsel %vm94, %v93, %v91
    %v97 = vmul.f32 %v96, %v60
    %v98 = vmul.f32 %v95, %v61
    %99 = vrot.lane.b32.xlu0 %v97, 1
    %v100 = vpop.permute.xlu0 %99
    %101 = vrot.lane.b32.xlu0 %v98, 1
    %v102 = vpop.permute.xlu0 %101
    %vm103 = vcmp.lt.s32.totalorder %v30, 1
    %v104 = vsel %vm103, %v100, %v102
    %v105 = vsel %vm103, %v102, %v100
    %v106 = vmul.f32 %v105, %v72
    %v107 = vmul.f32 %v104, %v73
    %v108 = vld [vmem:[%s1] sm:$0xff]
    %110 = vset.pattern.permute.xlu0 0
    %111 = vperm.xlu0 %110, %v108
    %v112 = vpop.permute.xlu0 %111
    %v114 = vmul.f32 %v106, %v112
    %v115 = vmul.f32 %v107, %v112
    %v116 = vadd.f32 %v88, %v114
    %v117 = vadd.f32 %v88, %v115
    %s118 = scalar_lea.vmem %s1, 8
    %v119 = vld [vmem:[%s118] sm:$0xff]
    %121 = vset.pattern.permute.xlu0 0
    %122 = vperm.xlu0 %121, %v119
    %v123 = vpop.permute.xlu0 %122
    %v125 = vmul.f32 %v97, %v123
    %v126 = vmul.f32 %v98, %v123
    %v127 = vadd.f32 %v116, %v125
    %v128 = vadd.f32 %v117, %v126
    %129 = vrot.lane.b32.xlu0 %v97, 127
    %v130 = vpop.permute.xlu0 %129
    %131 = vrot.lane.b32.xlu0 %v98, 127
    %v132 = vpop.permute.xlu0 %131
    %vm133 = vcmp.lt.s32.totalorder %v30, 127
    %v134 = vsel %vm133, %v130, %v132
    %v135 = vsel %vm133, %v132, %v130
    %v136 = vmul.f32 %v134, %v78
    %v137 = vmul.f32 %v135, %v79
    %s138 = scalar_lea.vmem %s1, 16
    %v139 = vld [vmem:[%s138] sm:$0xff]
    %141 = vset.pattern.permute.xlu0 0
    %142 = vperm.xlu0 %141, %v139
    %v143 = vpop.permute.xlu0 %142
    %v145 = vmul.f32 %v136, %v143
    %v146 = vmul.f32 %v137, %v143
    %v147 = vadd.f32 %v127, %v145
    %v148 = vadd.f32 %v128, %v146
    %149 = vrot.lane.b32.xlu0 %v27, 1
    %v150 = vpop.permute.xlu0 %149
    %151 = vrot.lane.b32.xlu0 %v28, 1
    %v152 = vpop.permute.xlu0 %151
    %v153 = vsel %vm103, %v150, %v152
    %v154 = vsel %vm103, %v152, %v150
    %v155 = vmul.f32 %v154, %v72
    %v156 = vmul.f32 %v153, %v73
    %s157 = scalar_lea.vmem %s1, 24
    %v158 = vld [vmem:[%s157] sm:$0xff]
    %160 = vset.pattern.permute.xlu0 0
    %161 = vperm.xlu0 %160, %v158
    %v162 = vpop.permute.xlu0 %161
    %v164 = vmul.f32 %v155, %v162
    %v165 = vmul.f32 %v156, %v162
    %v166 = vadd.f32 %v147, %v164
    %v167 = vadd.f32 %v148, %v165
    %s168 = scalar_lea.vmem %s1, 32
    %v169 = vld [vmem:[%s168] sm:$0xff]
    %171 = vset.pattern.permute.xlu0 0
    %172 = vperm.xlu0 %171, %v169
    %v173 = vpop.permute.xlu0 %172
    %v175 = vmul.f32 %v27, %v173
    %v176 = vmul.f32 %v28, %v173
    %v177 = vadd.f32 %v166, %v175
    %v178 = vadd.f32 %v167, %v176
    %179 = vrot.lane.b32.xlu0 %v27, 127
    %v180 = vpop.permute.xlu0 %179
    %181 = vrot.lane.b32.xlu0 %v28, 127
    %v182 = vpop.permute.xlu0 %181
    %v183 = vsel %vm133, %v180, %v182
    %v184 = vsel %vm133, %v182, %v180
    %v185 = vmul.f32 %v183, %v78
    %v186 = vmul.f32 %v184, %v79
    %s187 = scalar_lea.vmem %s1, 40
    %v188 = vld [vmem:[%s187] sm:$0xff]
    %190 = vset.pattern.permute.xlu0 0
    %191 = vperm.xlu0 %190, %v188
    %v192 = vpop.permute.xlu0 %191
    %v194 = vmul.f32 %v185, %v192
    %v195 = vmul.f32 %v186, %v192
    %v196 = vadd.f32 %v177, %v194
    %v197 = vadd.f32 %v178, %v195
    %198 = vrot.lane.b32.xlu0 %v27, 112
    %v199 = vpop.permute.xlu0 %198
    %200 = vrot.lane.b32.xlu0 %v28, 112
    %v201 = vpop.permute.xlu0 %200
    %vm202 = vcmp.lt.s32.totalorder %v30, 112
    %v203 = vsel %vm202, %v199, %v201
    %v204 = vsel %vm202, %v201, %v199
    %v205 = vmul.f32 %v203, %v66
    %v206 = vmul.f32 %v204, %v67
    %207 = vrot.lane.b32.xlu0 %v205, 1
    %v208 = vpop.permute.xlu0 %207
    %209 = vrot.lane.b32.xlu0 %v206, 1
    %v210 = vpop.permute.xlu0 %209
    %v211 = vsel %vm103, %v208, %v210
    %v212 = vsel %vm103, %v210, %v208
    %v213 = vmul.f32 %v212, %v72
    %v214 = vmul.f32 %v211, %v73
    %s215 = scalar_lea.vmem %s1, 48
    %v216 = vld [vmem:[%s215] sm:$0xff]
    %218 = vset.pattern.permute.xlu0 0
    %219 = vperm.xlu0 %218, %v216
    %v220 = vpop.permute.xlu0 %219
    %v222 = vmul.f32 %v213, %v220
    %v223 = vmul.f32 %v214, %v220
    %v224 = vadd.f32 %v196, %v222
    %v225 = vadd.f32 %v197, %v223
    %s226 = scalar_lea.vmem %s1, 56
    %v227 = vld [vmem:[%s226] sm:$0xff]
    %229 = vset.pattern.permute.xlu0 0
    %230 = vperm.xlu0 %229, %v227
    %v231 = vpop.permute.xlu0 %230
    %v233 = vmul.f32 %v205, %v231
    %v234 = vmul.f32 %v206, %v231
    %v235 = vadd.f32 %v224, %v233
    %v236 = vadd.f32 %v225, %v234
    %237 = vrot.lane.b32.xlu0 %v205, 127
    %v238 = vpop.permute.xlu0 %237
    %239 = vrot.lane.b32.xlu0 %v206, 127
    %v240 = vpop.permute.xlu0 %239
    %v241 = vsel %vm133, %v238, %v240
    %v242 = vsel %vm133, %v240, %v238
    %v243 = vmul.f32 %v241, %v78
    %v244 = vmul.f32 %v242, %v79
    %s245 = scalar_lea.vmem %s1, 64
    %v246 = vld [vmem:[%s245] sm:$0xff]
    %248 = vset.pattern.permute.xlu0 0
    %249 = vperm.xlu0 %248, %v246
    %v250 = vpop.permute.xlu0 %249
    %v252 = vmul.f32 %v243, %v250
    %v253 = vmul.f32 %v244, %v250
    %v254 = vadd.f32 %v235, %v252
    %v255 = vadd.f32 %v236, %v253
    %v256 = vmax.f32 %v254, 0.0
    %v257 = vmax.f32 %v255, 0.0
    %v258 = vld [vmem:[%s3] sm:$0xff]
    %vm259 = vcmask 64512
    %v261 = vsel %vm259, %v258, 0
    %263 = vmatprep.subr.mxu0 %v257
    %264 = vmatpush1.msra.mxu0 %v256
    %265 = vmatprep.subr.mxu0 0.0
    %266 = vmatpush1.msra.mxu0 0.0
    %267 = vmatprep.subr.mxu0 0.0
    %268 = vmatpush1.msra.mxu0 0.0
    %269 = vmatprep.subr.mxu0 0.0
    %270 = vmatpush1.msra.mxu0 0.0
    %271 = vmatprep.subr.mxu0 0.0
    %272 = vmatpush1.msra.mxu0 0.0
    %273 = vmatprep.subr.mxu0 0.0
    %274 = vmatpush1.msra.mxu0 0.0
    %275 = vmatprep.subr.mxu0 0.0
    %276 = vmatpush1.msra.mxu0 0.0
    %277 = vmatprep.subr.mxu0 0.0
    %278 = vmatpush1.msra.mxu0 0.0
    %279 = vmatprep.subr.mxu0 0.0
    %280 = vmatpush1.msra.mxu0 0.0
    %281 = vmatprep.subr.mxu0 0.0
    %282 = vmatpush1.msra.mxu0 0.0
    %283 = vmatprep.subr.mxu0 0.0
    %284 = vmatpush1.msra.mxu0 0.0
    %285 = vmatprep.subr.mxu0 0.0
    %286 = vmatpush1.msra.mxu0 0.0
    %287 = vmatprep.subr.mxu0 0.0
    %288 = vmatpush1.msra.mxu0 0.0
    %289 = vmatprep.subr.mxu0 0.0
    %290 = vmatpush1.msra.mxu0 0.0
    %291 = vmatprep.subr.mxu0 0.0
    %292 = vmatpush1.msra.mxu0 0.0
    %293 = vmatprep.subr.mxu0 0.0
    %294 = vmatpush1.msra.mxu0 0.0
    %295 = vmatprep.subr.mxu0 0.0
    %296 = vmatpush1.msra.mxu0 0.0
    %297 = vmatprep.subr.mxu0 0.0
    %298 = vmatpush1.msra.mxu0 0.0
    %299 = vmatprep.subr.mxu0 0.0
    %300 = vmatpush1.msra.mxu0 0.0
    %301 = vmatprep.subr.mxu0 0.0
    %302 = vmatpush1.msra.mxu0 0.0
    %303 = vmatprep.subr.mxu0 0.0
    %304 = vmatpush1.msra.mxu0 0.0
    %305 = vmatprep.subr.mxu0 0.0
    %306 = vmatpush1.msra.mxu0 0.0
    %307 = vmatprep.subr.mxu0 0.0
    %308 = vmatpush1.msra.mxu0 0.0
    %309 = vmatprep.subr.mxu0 0.0
    %310 = vmatpush1.msra.mxu0 0.0
    %311 = vmatprep.subr.mxu0 0.0
    %312 = vmatpush1.msra.mxu0 0.0
    %313 = vmatprep.subr.mxu0 0.0
    %314 = vmatpush1.msra.mxu0 0.0
    %315 = vmatprep.subr.mxu0 0.0
    %316 = vmatpush1.msra.mxu0 0.0
    %317 = vmatprep.subr.mxu0 0.0
    %318 = vmatpush1.msra.mxu0 0.0
    %319 = vmatprep.subr.mxu0 0.0
    %320 = vmatpush1.msra.mxu0 0.0
    %321 = vmatprep.subr.mxu0 0.0
    %322 = vmatpush1.msra.mxu0 0.0
    %323 = vmatprep.subr.mxu0 0.0
    %324 = vmatpush1.msra.mxu0 0.0
    %325 = vmatprep.subr.mxu0 0.0
    %326 = vmatpush1.msra.mxu0 0.0
    %327 = vmatprep.mubr.f32.mxu0 0.0
    %328 = vmatmul.mubr.f32.gmra.mrb[0].mxu0 %v261
    %v329 = vpop.f32.mrb[0].mxu0
    %v330 = vadd.f32 0.0, %v329
    %v331 = vpop.f32.mrb[0].mxu0
    %v332 = vadd.f32 0.0, %v331
    %333 = vdwg.mxu0
    %335 = vset.pattern.permute.xlu0 0
    %336 = vperm.xlu0 %335, %v82
    %v337 = vpop.permute.xlu0 %336
    %v339 = vmul.f32 %v330, %v337
    %v340 = vmul.f32 %v332, %v337
    %342 = vset.pattern.permute.xlu0 0
    %343 = vperm.xlu0 %342, %v84
    %v344 = vpop.permute.xlu0 %343
    %v346 = vadd.f32 %v339, %v344
    %v347 = vadd.f32 %v340, %v344
    %v348 = vmax.f32 %v346, 0.0
    %v349 = vmax.f32 %v347, 0.0
    %v350 = vld [vmem:[%s5] sm:$0xff]
    %s351 = scalar_lea.vmem %s5, 8
    %v352 = vld [vmem:[%s351] sm:$0xff]
    %s353 = scalar_lea.vmem %s5, 16
    %v354 = vld [vmem:[%s353] sm:$0xff]
    %356 = vset.pattern.permute.xlu0 0
    %357 = vperm.xlu0 %356, %v350
    %v358 = vpop.permute.xlu0 %357
    %360 = vrot.lane.b32.xlu0 %v348, 16
    %v361 = vpop.permute.xlu0 %360
    %362 = vrot.lane.b32.xlu0 %v349, 16
    %v363 = vpop.permute.xlu0 %362
    %v364 = vsel %vm94, %v361, %v363
    %v365 = vsel %vm94, %v363, %v361
    %v366 = vmul.f32 %v365, %v60
    %v367 = vmul.f32 %v364, %v61
    %368 = vrot.lane.b32.xlu0 %v366, 1
    %v369 = vpop.permute.xlu0 %368
    %370 = vrot.lane.b32.xlu0 %v367, 1
    %v371 = vpop.permute.xlu0 %370
    %v372 = vsel %vm103, %v369, %v371
    %v373 = vsel %vm103, %v371, %v369
    %v374 = vmul.f32 %v373, %v72
    %v375 = vmul.f32 %v372, %v73
    %v376 = vld [vmem:[%s4] sm:$0xff]
    %378 = vset.pattern.permute.xlu0 0
    %379 = vperm.xlu0 %378, %v376
    %v380 = vpop.permute.xlu0 %379
    %v382 = vmul.f32 %v374, %v380
    %v383 = vmul.f32 %v375, %v380
    %v384 = vadd.f32 %v358, %v382
    %v385 = vadd.f32 %v358, %v383
    %s386 = scalar_lea.vmem %s4, 8
    %v387 = vld [vmem:[%s386] sm:$0xff]
    %389 = vset.pattern.permute.xlu0 0
    %390 = vperm.xlu0 %389, %v387
    %v391 = vpop.permute.xlu0 %390
    %v393 = vmul.f32 %v366, %v391
    %v394 = vmul.f32 %v367, %v391
    %v395 = vadd.f32 %v384, %v393
    %v396 = vadd.f32 %v385, %v394
    %397 = vrot.lane.b32.xlu0 %v366, 127
    %v398 = vpop.permute.xlu0 %397
    %399 = vrot.lane.b32.xlu0 %v367, 127
    %v400 = vpop.permute.xlu0 %399
    %v401 = vsel %vm133, %v398, %v400
    %v402 = vsel %vm133, %v400, %v398
    %v403 = vmul.f32 %v401, %v78
    %v404 = vmul.f32 %v402, %v79
    %s405 = scalar_lea.vmem %s4, 16
    %v406 = vld [vmem:[%s405] sm:$0xff]
    %408 = vset.pattern.permute.xlu0 0
    %409 = vperm.xlu0 %408, %v406
    %v410 = vpop.permute.xlu0 %409
    %v412 = vmul.f32 %v403, %v410
    %v413 = vmul.f32 %v404, %v410
    %v414 = vadd.f32 %v395, %v412
    %v415 = vadd.f32 %v396, %v413
    %416 = vrot.lane.b32.xlu0 %v348, 1
    %v417 = vpop.permute.xlu0 %416
    %418 = vrot.lane.b32.xlu0 %v349, 1
    %v419 = vpop.permute.xlu0 %418
    %v420 = vsel %vm103, %v417, %v419
    %v421 = vsel %vm103, %v419, %v417
    %v422 = vmul.f32 %v421, %v72
    %v423 = vmul.f32 %v420, %v73
    %s424 = scalar_lea.vmem %s4, 24
    %v425 = vld [vmem:[%s424] sm:$0xff]
    %427 = vset.pattern.permute.xlu0 0
    %428 = vperm.xlu0 %427, %v425
    %v429 = vpop.permute.xlu0 %428
    %v431 = vmul.f32 %v422, %v429
    %v432 = vmul.f32 %v423, %v429
    %v433 = vadd.f32 %v414, %v431
    %v434 = vadd.f32 %v415, %v432
    %s435 = scalar_lea.vmem %s4, 32
    %v436 = vld [vmem:[%s435] sm:$0xff]
    %438 = vset.pattern.permute.xlu0 0
    %439 = vperm.xlu0 %438, %v436
    %v440 = vpop.permute.xlu0 %439
    %v442 = vmul.f32 %v348, %v440
    %v443 = vmul.f32 %v349, %v440
    %v444 = vadd.f32 %v433, %v442
    %v445 = vadd.f32 %v434, %v443
    %446 = vrot.lane.b32.xlu0 %v348, 127
    %v447 = vpop.permute.xlu0 %446
    %448 = vrot.lane.b32.xlu0 %v349, 127
    %v449 = vpop.permute.xlu0 %448
    %v450 = vsel %vm133, %v447, %v449
    %v451 = vsel %vm133, %v449, %v447
    %v452 = vmul.f32 %v450, %v78
    %v453 = vmul.f32 %v451, %v79
    %s454 = scalar_lea.vmem %s4, 40
    %v455 = vld [vmem:[%s454] sm:$0xff]
    %457 = vset.pattern.permute.xlu0 0
    %458 = vperm.xlu0 %457, %v455
    %v459 = vpop.permute.xlu0 %458
    %v461 = vmul.f32 %v452, %v459
    %v462 = vmul.f32 %v453, %v459
    %v463 = vadd.f32 %v444, %v461
    %v464 = vadd.f32 %v445, %v462
    %465 = vrot.lane.b32.xlu0 %v348, 112
    %v466 = vpop.permute.xlu0 %465
    %467 = vrot.lane.b32.xlu0 %v349, 112
    %v468 = vpop.permute.xlu0 %467
    %v469 = vsel %vm202, %v466, %v468
    %v470 = vsel %vm202, %v468, %v466
    %v471 = vmul.f32 %v469, %v66
    %v472 = vmul.f32 %v470, %v67
    %473 = vrot.lane.b32.xlu0 %v471, 1
    %v474 = vpop.permute.xlu0 %473
    %475 = vrot.lane.b32.xlu0 %v472, 1
    %v476 = vpop.permute.xlu0 %475
    %v477 = vsel %vm103, %v474, %v476
    %v478 = vsel %vm103, %v476, %v474
    %v479 = vmul.f32 %v478, %v72
    %v480 = vmul.f32 %v477, %v73
    %s481 = scalar_lea.vmem %s4, 48
    %v482 = vld [vmem:[%s481] sm:$0xff]
    %484 = vset.pattern.permute.xlu0 0
    %485 = vperm.xlu0 %484, %v482
    %v486 = vpop.permute.xlu0 %485
    %v488 = vmul.f32 %v479, %v486
    %v489 = vmul.f32 %v480, %v486
    %v490 = vadd.f32 %v463, %v488
    %v491 = vadd.f32 %v464, %v489
    %s492 = scalar_lea.vmem %s4, 56
    %v493 = vld [vmem:[%s492] sm:$0xff]
    %495 = vset.pattern.permute.xlu0 0
    %496 = vperm.xlu0 %495, %v493
    %v497 = vpop.permute.xlu0 %496
    %v499 = vmul.f32 %v471, %v497
    %v500 = vmul.f32 %v472, %v497
    %v501 = vadd.f32 %v490, %v499
    %v502 = vadd.f32 %v491, %v500
    %503 = vrot.lane.b32.xlu0 %v471, 127
    %v504 = vpop.permute.xlu0 %503
    %505 = vrot.lane.b32.xlu0 %v472, 127
    %v506 = vpop.permute.xlu0 %505
    %v507 = vsel %vm133, %v504, %v506
    %v508 = vsel %vm133, %v506, %v504
    %v509 = vmul.f32 %v507, %v78
    %v510 = vmul.f32 %v508, %v79
    %s511 = scalar_lea.vmem %s4, 64
    %v512 = vld [vmem:[%s511] sm:$0xff]
    %514 = vset.pattern.permute.xlu0 0
    %515 = vperm.xlu0 %514, %v512
    %v516 = vpop.permute.xlu0 %515
    %v518 = vmul.f32 %v509, %v516
    %v519 = vmul.f32 %v510, %v516
    %v520 = vadd.f32 %v501, %v518
    %v521 = vadd.f32 %v502, %v519
    %v522 = vmax.f32 %v520, 0.0
    %v523 = vmax.f32 %v521, 0.0
    %v524 = vld [vmem:[%s6] sm:$0xff]
    %v526 = vsel %vm259, %v524, 0
    %528 = vmatprep.subr.mxu0 %v523
    %529 = vmatpush1.msra.mxu0 %v522
    %530 = vmatprep.subr.mxu0 0.0
    %531 = vmatpush1.msra.mxu0 0.0
    %532 = vmatprep.subr.mxu0 0.0
    %533 = vmatpush1.msra.mxu0 0.0
    %534 = vmatprep.subr.mxu0 0.0
    %535 = vmatpush1.msra.mxu0 0.0
    %536 = vmatprep.subr.mxu0 0.0
    %537 = vmatpush1.msra.mxu0 0.0
    %538 = vmatprep.subr.mxu0 0.0
    %539 = vmatpush1.msra.mxu0 0.0
    %540 = vmatprep.subr.mxu0 0.0
    %541 = vmatpush1.msra.mxu0 0.0
    %542 = vmatprep.subr.mxu0 0.0
    %543 = vmatpush1.msra.mxu0 0.0
    %544 = vmatprep.subr.mxu0 0.0
    %545 = vmatpush1.msra.mxu0 0.0
    %546 = vmatprep.subr.mxu0 0.0
    %547 = vmatpush1.msra.mxu0 0.0
    %548 = vmatprep.subr.mxu0 0.0
    %549 = vmatpush1.msra.mxu0 0.0
    %550 = vmatprep.subr.mxu0 0.0
    %551 = vmatpush1.msra.mxu0 0.0
    %552 = vmatprep.subr.mxu0 0.0
    %553 = vmatpush1.msra.mxu0 0.0
    %554 = vmatprep.subr.mxu0 0.0
    %555 = vmatpush1.msra.mxu0 0.0
    %556 = vmatprep.subr.mxu0 0.0
    %557 = vmatpush1.msra.mxu0 0.0
    %558 = vmatprep.subr.mxu0 0.0
    %559 = vmatpush1.msra.mxu0 0.0
    %560 = vmatprep.subr.mxu0 0.0
    %561 = vmatpush1.msra.mxu0 0.0
    %562 = vmatprep.subr.mxu0 0.0
    %563 = vmatpush1.msra.mxu0 0.0
    %564 = vmatprep.subr.mxu0 0.0
    %565 = vmatpush1.msra.mxu0 0.0
    %566 = vmatprep.subr.mxu0 0.0
    %567 = vmatpush1.msra.mxu0 0.0
    %568 = vmatprep.subr.mxu0 0.0
    %569 = vmatpush1.msra.mxu0 0.0
    %570 = vmatprep.subr.mxu0 0.0
    %571 = vmatpush1.msra.mxu0 0.0
    %572 = vmatprep.subr.mxu0 0.0
    %573 = vmatpush1.msra.mxu0 0.0
    %574 = vmatprep.subr.mxu0 0.0
    %575 = vmatpush1.msra.mxu0 0.0
    %576 = vmatprep.subr.mxu0 0.0
    %577 = vmatpush1.msra.mxu0 0.0
    %578 = vmatprep.subr.mxu0 0.0
    %579 = vmatpush1.msra.mxu0 0.0
    %580 = vmatprep.subr.mxu0 0.0
    %581 = vmatpush1.msra.mxu0 0.0
    %582 = vmatprep.subr.mxu0 0.0
    %583 = vmatpush1.msra.mxu0 0.0
    %584 = vmatprep.subr.mxu0 0.0
    %585 = vmatpush1.msra.mxu0 0.0
    %586 = vmatprep.subr.mxu0 0.0
    %587 = vmatpush1.msra.mxu0 0.0
    %588 = vmatprep.subr.mxu0 0.0
    %589 = vmatpush1.msra.mxu0 0.0
    %590 = vmatprep.subr.mxu0 0.0
    %591 = vmatpush1.msra.mxu0 0.0
    %592 = vmatprep.mubr.f32.mxu0 0.0
    %593 = vmatmul.mubr.f32.gmra.mrb[0].mxu0 %v526
    %v594 = vpop.f32.mrb[0].mxu0
    %v595 = vadd.f32 0.0, %v594
    %v596 = vpop.f32.mrb[0].mxu0
    %v597 = vadd.f32 0.0, %v596
    %598 = vdwg.mxu0
    %600 = vset.pattern.permute.xlu0 0
    %601 = vperm.xlu0 %600, %v352
    %v602 = vpop.permute.xlu0 %601
    %v604 = vmul.f32 %v595, %v602
    %v605 = vmul.f32 %v597, %v602
    %607 = vset.pattern.permute.xlu0 0
    %608 = vperm.xlu0 %607, %v354
    %v609 = vpop.permute.xlu0 %608
    %v611 = vadd.f32 %v604, %v609
    %v612 = vadd.f32 %v605, %v609
    %v613 = vadd.f32 %v611, %v27
    %v614 = vadd.f32 %v612, %v28
    %v615 = vmax.f32 %v613, 0.0
    %v616 = vmax.f32 %v614, 0.0
    %617 = vst [vmem:[#allocation2] sm:$0xff] %v615
    %618 = vst [vmem:[#allocation2 + $0x8] sm:$0xff] %v616
    // Predicated region
    $region30: #{tpu_custom_call.1} parent=1 // pred_check
      _
    $region31: #{tpu_custom_call.1} parent=1 // pred_check_branch
      %620 = sbr.rel (0) target = $region33
    $region32: #{tpu_custom_call.1} parent=1 // pred_region
      %s622 = ssub.s32 256, 256
      %623 = vsyncadd [#allocation3], %s622
      %s625 = sshll.u32 [#allocation2], 4
      %s626 = int_to_ptr.vmem [resolvable:$true] %s625
      %628 = dma.vmem_to_hbm [thread:$0]  %s626, 256, %s7, [#allocation3]
    $region33: #{tpu_custom_call.1} parent=1 // pred_fallthru
      _
    // Predicated region
    $region34: #{tpu_custom_call.1} parent=1 // pred_check
      _
    $region35: #{tpu_custom_call.1} parent=1 // pred_check_branch
      %630 = sbr.rel (0) target = $region37
    $region36: #{tpu_custom_call.1} parent=1 // pred_region
      %631 = dma.done [#allocation3], 256
    $region37: #{tpu_custom_call.1} parent=1 // pred_fallthru
      _
    %632 = vsyncpa [#allocation3], 1

// kernel: tpu_custom_call.1
$region0: #{tpu_custom_call.1}
  #allocation0 [shape = 'u32[]', space=smem, size = 0x4, offset = 0x4, fixed_abs, tag = 'smem constant byte address 0x4 - core index']
  #allocation1 [shape = 'u32[144,128]{1,0:T(1,128)}', space=vmem, size = 0x12000, scoped, tag = 'internal scratch']
  %s0 = inlined_call_operand.vmem [shape: f32[8,256], index: 0, kind: input, shape index: {}]
  %s1 = inlined_call_operand.vmem [shape: f32[9,8,1], index: 1, kind: input, shape index: {}]
  %s2 = inlined_call_operand.vmem [shape: f32[3,8,1], index: 2, kind: input, shape index: {}]
  %s3 = inlined_call_operand.vmem [shape: f32[8,8], index: 3, kind: input, shape index: {}]
  %s4 = inlined_call_operand.vmem [shape: f32[9,8,1], index: 4, kind: input, shape index: {}]
  %s5 = inlined_call_operand.vmem [shape: f32[3,8,1], index: 5, kind: input, shape index: {}]
  %s6 = inlined_call_operand.vmem [shape: f32[8,8], index: 6, kind: input, shape index: {}]
  %s7 = inlined_call_operand.hbm [shape: f32[8,256], index: 7, kind: output, shape index: {}]
  %s8 = sld [smem:[#allocation0]]
  $region38: #{tpu_custom_call.1} parent=0
    _
  %s10 = ssub.s32 1, %s8
  %s11 = scalar_select 0, %s10, %s8
  $region1: #{tpu_custom_call.1} parent=0
    #allocation2 [shape = 'u8[8192]{0}', space=vmem, size = 0x2000, scoped, tag = 'output window, operand 0, single buffered']
    #allocation3 [shape = 's32[1]{0}', space=sflag, size = 0x4, scoped, tag = 'scoped memory for tpu_custom_call.1']
    %12 = vsyncpa [#allocation3], 0
    // Predicated region
    $region2: #{tpu_custom_call.1} parent=1 // pred_check
      _
    $region3: #{tpu_custom_call.1} parent=1 // pred_check_branch
      %14 = sbr.rel (0) target = $region5
    $region4: #{tpu_custom_call.1} parent=1 // pred_region
      _
    $region5: #{tpu_custom_call.1} parent=1 // pred_fallthru
      _
    // Predicated region
    $region6: #{tpu_custom_call.1} parent=1 // pred_check
      _
    $region7: #{tpu_custom_call.1} parent=1 // pred_check_branch
      %16 = sbr.rel (0) target = $region9
    $region8: #{tpu_custom_call.1} parent=1 // pred_region
      _
    $region9: #{tpu_custom_call.1} parent=1 // pred_fallthru
      _
    // Predicated region
    $region10: #{tpu_custom_call.1} parent=1 // pred_check
      _
    $region11: #{tpu_custom_call.1} parent=1 // pred_check_branch
      %18 = sbr.rel (0) target = $region13
    $region12: #{tpu_custom_call.1} parent=1 // pred_region
      _
    $region13: #{tpu_custom_call.1} parent=1 // pred_fallthru
      _
    // Predicated region
    $region14: #{tpu_custom_call.1} parent=1 // pred_check
      _
    $region15: #{tpu_custom_call.1} parent=1 // pred_check_branch
      %20 = sbr.rel (0) target = $region17
    $region16: #{tpu_custom_call.1} parent=1 // pred_region
      _
    $region17: #{tpu_custom_call.1} parent=1 // pred_fallthru
      _
    // Predicated region
    $region18: #{tpu_custom_call.1} parent=1 // pred_check
      _
    $region19: #{tpu_custom_call.1} parent=1 // pred_check_branch
      %22 = sbr.rel (0) target = $region21
    $region20: #{tpu_custom_call.1} parent=1 // pred_region
      _
    $region21: #{tpu_custom_call.1} parent=1 // pred_fallthru
      _
    // Predicated region
    $region22: #{tpu_custom_call.1} parent=1 // pred_check
      _
    $region23: #{tpu_custom_call.1} parent=1 // pred_check_branch
      %24 = sbr.rel (0) target = $region25
    $region24: #{tpu_custom_call.1} parent=1 // pred_region
      _
    $region25: #{tpu_custom_call.1} parent=1 // pred_fallthru
      _
    // Predicated region
    $region26: #{tpu_custom_call.1} parent=1 // pred_check
      _
    $region27: #{tpu_custom_call.1} parent=1 // pred_check_branch
      %26 = sbr.rel (0) target = $region29
    $region28: #{tpu_custom_call.1} parent=1 // pred_region
      _
    $region29: #{tpu_custom_call.1} parent=1 // pred_fallthru
      _
    %v27 = vld [vmem:[%s0] sm:$0xff]
    %v28 = vld [vmem:[%s0 + $0x8] sm:$0xff]
    %v29 = vlaneseq
    %v30 = vand.u32 %v29, 127
    %v31 = vadd.s32 %v30, 128
    %vm32 = vcmp.lt.s32.totalorder %v30, 0
    %v33 = vsub.s32 0, %v30
    %v34 = vsel %vm32, %v33, %v30
    %v35 = vshrl.u32 %v34, 4
    %v36 = vand.u32 %v34, 15
    %v37 = vsub.s32 0, %v36
    %v38 = vsel %vm32, %v37, %v36
    %vm39 = vcmp.lt.s32.totalorder %v31, 0
    %v40 = vsub.s32 0, %v31
    %v41 = vsel %vm39, %v40, %v31
    %v42 = vshrl.u32 %v41, 4
    %v43 = vand.u32 %v41, 15
    %v44 = vsub.s32 0, %v43
    %v45 = vsel %vm39, %v44, %v43
    %vm46 = vcmp.ne.s32.totalorder %v38, 0
    %vm47 = vcmp.ne.s32.totalorder %v45, 0
    %vm48 = vcmp.lt.s32.totalorder %v38, 0
    %vm49 = vcmp.lt.s32.totalorder %v45, 0
    %vm50 = vmand %vm48, %vm46
    %vm51 = vmand %vm49, %vm47
    %v52 = vadd.s32 %v38, 16
    %v53 = vadd.s32 %v45, 16
    %v54 = vsel %vm50, %v52, %v38
    %v55 = vsel %vm51, %v53, %v45
    %vm56 = vcmp.ge.s32.totalorder %v30, 16
    %vm57 = vcmp.ge.s32.totalorder %v31, 16
    %v58 = vsel %vm56, 1, 0
    %v59 = vsel %vm57, 1, 0
    %v60 = vcvt.s32.f32 %v58
    %v61 = vcvt.s32.f32 %v59
    %vm62 = vcmp.lt.s32.totalorder %v30, 240
    %vm63 = vcmp.lt.s32.totalorder %v31, 240
    %v64 = vsel %vm62, 1, 0
    %v65 = vsel %vm63, 1, 0
    %v66 = vcvt.s32.f32 %v64
    %v67 = vcvt.s32.f32 %v65
    %vm68 = vcmp.ge.s32.totalorder %v54, 1
    %vm69 = vcmp.ge.s32.totalorder %v55, 1
    %v70 = vsel %vm68, 1, 0
    %v71 = vsel %vm69, 1, 0
    %v72 = vcvt.s32.f32 %v70
    %v73 = vcvt.s32.f32 %v71
    %vm74 = vcmp.lt.s32.totalorder %v54, 15
    %vm75 = vcmp.lt.s32.totalorder %v55, 15
    %v76 = vsel %vm74, 1, 0
    %v77 = vsel %vm75, 1, 0
    %v78 = vcvt.s32.f32 %v76
    %v79 = vcvt.s32.f32 %v77
    %v80 = vld [vmem:[%s2] sm:$0xff]
    %s81 = scalar_lea.vmem %s2, 8
    %v82 = vld [vmem:[%s81] sm:$0xff]
    %s83 = scalar_lea.vmem %s2, 16
    %v84 = vld [vmem:[%s83] sm:$0xff]
    %86 = vset.pattern.permute.xlu0 0
    %87 = vperm.xlu0 %86, %v80
    %v88 = vpop.permute.xlu0 %87
    %90 = vrot.lane.b32.xlu0 %v27, 16
    %v91 = vpop.permute.xlu0 %90
    %92 = vrot.lane.b32.xlu0 %v28, 16
    %v93 = vpop.permute.xlu0 %92
    %vm94 = vcmp.lt.s32.totalorder %v30, 16
    %v95 = vsel %vm94, %v91, %v93
    %v96 = vsel %vm94, %v93, %v91
    %v97 = vmul.f32 %v96, %v60
    %v98 = vmul.f32 %v95, %v61
    %99 = vrot.lane.b32.xlu0 %v97, 1
    %v100 = vpop.permute.xlu0 %99
    %101 = vrot.lane.b32.xlu0 %v98, 1
    %v102 = vpop.permute.xlu0 %101
    %vm103 = vcmp.lt.s32.totalorder %v30, 1
    %v104 = vsel %vm103, %v100, %v102
    %v105 = vsel %vm103, %v102, %v100
    %v106 = vmul.f32 %v105, %v72
    %v107 = vmul.f32 %v104, %v73
    %v108 = vld [vmem:[%s1] sm:$0xff]
    %110 = vset.pattern.permute.xlu0 0
    %111 = vperm.xlu0 %110, %v108
    %v112 = vpop.permute.xlu0 %111
    %v114 = vmul.f32 %v106, %v112
    %v115 = vmul.f32 %v107, %v112
    %v116 = vadd.f32 %v88, %v114
    %v117 = vadd.f32 %v88, %v115
    %s118 = scalar_lea.vmem %s1, 8
    %v119 = vld [vmem:[%s118] sm:$0xff]
    %121 = vset.pattern.permute.xlu0 0
    %122 = vperm.xlu0 %121, %v119
    %v123 = vpop.permute.xlu0 %122
    %v125 = vmul.f32 %v97, %v123
    %v126 = vmul.f32 %v98, %v123
    %v127 = vadd.f32 %v116, %v125
    %v128 = vadd.f32 %v117, %v126
    %129 = vrot.lane.b32.xlu0 %v97, 127
    %v130 = vpop.permute.xlu0 %129
    %131 = vrot.lane.b32.xlu0 %v98, 127
    %v132 = vpop.permute.xlu0 %131
    %vm133 = vcmp.lt.s32.totalorder %v30, 127
    %v134 = vsel %vm133, %v130, %v132
    %v135 = vsel %vm133, %v132, %v130
    %v136 = vmul.f32 %v134, %v78
    %v137 = vmul.f32 %v135, %v79
    %s138 = scalar_lea.vmem %s1, 16
    %v139 = vld [vmem:[%s138] sm:$0xff]
    %141 = vset.pattern.permute.xlu0 0
    %142 = vperm.xlu0 %141, %v139
    %v143 = vpop.permute.xlu0 %142
    %v145 = vmul.f32 %v136, %v143
    %v146 = vmul.f32 %v137, %v143
    %v147 = vadd.f32 %v127, %v145
    %v148 = vadd.f32 %v128, %v146
    %149 = vrot.lane.b32.xlu0 %v27, 1
    %v150 = vpop.permute.xlu0 %149
    %151 = vrot.lane.b32.xlu0 %v28, 1
    %v152 = vpop.permute.xlu0 %151
    %v153 = vsel %vm103, %v150, %v152
    %v154 = vsel %vm103, %v152, %v150
    %v155 = vmul.f32 %v154, %v72
    %v156 = vmul.f32 %v153, %v73
    %s157 = scalar_lea.vmem %s1, 24
    %v158 = vld [vmem:[%s157] sm:$0xff]
    %160 = vset.pattern.permute.xlu0 0
    %161 = vperm.xlu0 %160, %v158
    %v162 = vpop.permute.xlu0 %161
    %v164 = vmul.f32 %v155, %v162
    %v165 = vmul.f32 %v156, %v162
    %v166 = vadd.f32 %v147, %v164
    %v167 = vadd.f32 %v148, %v165
    %s168 = scalar_lea.vmem %s1, 32
    %v169 = vld [vmem:[%s168] sm:$0xff]
    %171 = vset.pattern.permute.xlu0 0
    %172 = vperm.xlu0 %171, %v169
    %v173 = vpop.permute.xlu0 %172
    %v175 = vmul.f32 %v27, %v173
    %v176 = vmul.f32 %v28, %v173
    %v177 = vadd.f32 %v166, %v175
    %v178 = vadd.f32 %v167, %v176
    %179 = vrot.lane.b32.xlu0 %v27, 127
    %v180 = vpop.permute.xlu0 %179
    %181 = vrot.lane.b32.xlu0 %v28, 127
    %v182 = vpop.permute.xlu0 %181
    %v183 = vsel %vm133, %v180, %v182
    %v184 = vsel %vm133, %v182, %v180
    %v185 = vmul.f32 %v183, %v78
    %v186 = vmul.f32 %v184, %v79
    %s187 = scalar_lea.vmem %s1, 40
    %v188 = vld [vmem:[%s187] sm:$0xff]
    %190 = vset.pattern.permute.xlu0 0
    %191 = vperm.xlu0 %190, %v188
    %v192 = vpop.permute.xlu0 %191
    %v194 = vmul.f32 %v185, %v192
    %v195 = vmul.f32 %v186, %v192
    %v196 = vadd.f32 %v177, %v194
    %v197 = vadd.f32 %v178, %v195
    %198 = vrot.lane.b32.xlu0 %v27, 112
    %v199 = vpop.permute.xlu0 %198
    %200 = vrot.lane.b32.xlu0 %v28, 112
    %v201 = vpop.permute.xlu0 %200
    %vm202 = vcmp.lt.s32.totalorder %v30, 112
    %v203 = vsel %vm202, %v199, %v201
    %v204 = vsel %vm202, %v201, %v199
    %v205 = vmul.f32 %v203, %v66
    %v206 = vmul.f32 %v204, %v67
    %207 = vrot.lane.b32.xlu0 %v205, 1
    %v208 = vpop.permute.xlu0 %207
    %209 = vrot.lane.b32.xlu0 %v206, 1
    %v210 = vpop.permute.xlu0 %209
    %v211 = vsel %vm103, %v208, %v210
    %v212 = vsel %vm103, %v210, %v208
    %v213 = vmul.f32 %v212, %v72
    %v214 = vmul.f32 %v211, %v73
    %s215 = scalar_lea.vmem %s1, 48
    %v216 = vld [vmem:[%s215] sm:$0xff]
    %218 = vset.pattern.permute.xlu0 0
    %219 = vperm.xlu0 %218, %v216
    %v220 = vpop.permute.xlu0 %219
    %v222 = vmul.f32 %v213, %v220
    %v223 = vmul.f32 %v214, %v220
    %v224 = vadd.f32 %v196, %v222
    %v225 = vadd.f32 %v197, %v223
    %s226 = scalar_lea.vmem %s1, 56
    %v227 = vld [vmem:[%s226] sm:$0xff]
    %229 = vset.pattern.permute.xlu0 0
    %230 = vperm.xlu0 %229, %v227
    %v231 = vpop.permute.xlu0 %230
    %v233 = vmul.f32 %v205, %v231
    %v234 = vmul.f32 %v206, %v231
    %v235 = vadd.f32 %v224, %v233
    %v236 = vadd.f32 %v225, %v234
    %237 = vrot.lane.b32.xlu0 %v205, 127
    %v238 = vpop.permute.xlu0 %237
    %239 = vrot.lane.b32.xlu0 %v206, 127
    %v240 = vpop.permute.xlu0 %239
    %v241 = vsel %vm133, %v238, %v240
    %v242 = vsel %vm133, %v240, %v238
    %v243 = vmul.f32 %v241, %v78
    %v244 = vmul.f32 %v242, %v79
    %s245 = scalar_lea.vmem %s1, 64
    %v246 = vld [vmem:[%s245] sm:$0xff]
    %248 = vset.pattern.permute.xlu0 0
    %249 = vperm.xlu0 %248, %v246
    %v250 = vpop.permute.xlu0 %249
    %v252 = vmul.f32 %v243, %v250
    %v253 = vmul.f32 %v244, %v250
    %v254 = vadd.f32 %v235, %v252
    %v255 = vadd.f32 %v236, %v253
    %v256 = vmax.f32 %v254, 0.0
    %v257 = vmax.f32 %v255, 0.0
    %v258 = vld [vmem:[%s3] sm:$0xff]
    %vm259 = vcmask 64512
    %v261 = vsel %vm259, %v258, 0
    %263 = vmatprep.subr.mxu0 %v257
    %264 = vmatpush1.msra.mxu0 %v256
    %265 = vmatprep.subr.mxu0 0.0
    %266 = vmatpush1.msra.mxu0 0.0
    %267 = vmatprep.subr.mxu0 0.0
    %268 = vmatpush1.msra.mxu0 0.0
    %269 = vmatprep.subr.mxu0 0.0
    %270 = vmatpush1.msra.mxu0 0.0
    %271 = vmatprep.subr.mxu0 0.0
    %272 = vmatpush1.msra.mxu0 0.0
    %273 = vmatprep.subr.mxu0 0.0
    %274 = vmatpush1.msra.mxu0 0.0
    %275 = vmatprep.subr.mxu0 0.0
    %276 = vmatpush1.msra.mxu0 0.0
    %277 = vmatprep.subr.mxu0 0.0
    %278 = vmatpush1.msra.mxu0 0.0
    %279 = vmatprep.subr.mxu0 0.0
    %280 = vmatpush1.msra.mxu0 0.0
    %281 = vmatprep.subr.mxu0 0.0
    %282 = vmatpush1.msra.mxu0 0.0
    %283 = vmatprep.subr.mxu0 0.0
    %284 = vmatpush1.msra.mxu0 0.0
    %285 = vmatprep.subr.mxu0 0.0
    %286 = vmatpush1.msra.mxu0 0.0
    %287 = vmatprep.subr.mxu0 0.0
    %288 = vmatpush1.msra.mxu0 0.0
    %289 = vmatprep.subr.mxu0 0.0
    %290 = vmatpush1.msra.mxu0 0.0
    %291 = vmatprep.subr.mxu0 0.0
    %292 = vmatpush1.msra.mxu0 0.0
    %293 = vmatprep.subr.mxu0 0.0
    %294 = vmatpush1.msra.mxu0 0.0
    %295 = vmatprep.subr.mxu0 0.0
    %296 = vmatpush1.msra.mxu0 0.0
    %297 = vmatprep.subr.mxu0 0.0
    %298 = vmatpush1.msra.mxu0 0.0
    %299 = vmatprep.subr.mxu0 0.0
    %300 = vmatpush1.msra.mxu0 0.0
    %301 = vmatprep.subr.mxu0 0.0
    %302 = vmatpush1.msra.mxu0 0.0
    %303 = vmatprep.subr.mxu0 0.0
    %304 = vmatpush1.msra.mxu0 0.0
    %305 = vmatprep.subr.mxu0 0.0
    %306 = vmatpush1.msra.mxu0 0.0
    %307 = vmatprep.subr.mxu0 0.0
    %308 = vmatpush1.msra.mxu0 0.0
    %309 = vmatprep.subr.mxu0 0.0
    %310 = vmatpush1.msra.mxu0 0.0
    %311 = vmatprep.subr.mxu0 0.0
    %312 = vmatpush1.msra.mxu0 0.0
    %313 = vmatprep.subr.mxu0 0.0
    %314 = vmatpush1.msra.mxu0 0.0
    %315 = vmatprep.subr.mxu0 0.0
    %316 = vmatpush1.msra.mxu0 0.0
    %317 = vmatprep.subr.mxu0 0.0
    %318 = vmatpush1.msra.mxu0 0.0
    %319 = vmatprep.subr.mxu0 0.0
    %320 = vmatpush1.msra.mxu0 0.0
    %321 = vmatprep.subr.mxu0 0.0
    %322 = vmatpush1.msra.mxu0 0.0
    %323 = vmatprep.subr.mxu0 0.0
    %324 = vmatpush1.msra.mxu0 0.0
    %325 = vmatprep.subr.mxu0 0.0
    %326 = vmatpush1.msra.mxu0 0.0
    %327 = vmatprep.mubr.f32.mxu0 0.0
    %328 = vmatmul.mubr.f32.gmra.mrb[0].mxu0 %v261
    %v329 = vpop.f32.mrb[0].mxu0
    %v330 = vadd.f32 0.0, %v329
    %v331 = vpop.f32.mrb[0].mxu0
    %v332 = vadd.f32 0.0, %v331
    %333 = vdwg.mxu0
    %335 = vset.pattern.permute.xlu0 0
    %336 = vperm.xlu0 %335, %v82
    %v337 = vpop.permute.xlu0 %336
    %v339 = vmul.f32 %v330, %v337
    %v340 = vmul.f32 %v332, %v337
    %342 = vset.pattern.permute.xlu0 0
    %343 = vperm.xlu0 %342, %v84
    %v344 = vpop.permute.xlu0 %343
    %v346 = vadd.f32 %v339, %v344
    %v347 = vadd.f32 %v340, %v344
    %v348 = vmax.f32 %v346, 0.0
    %v349 = vmax.f32 %v347, 0.0
    %v350 = vld [vmem:[%s5] sm:$0xff]
    %s351 = scalar_lea.vmem %s5, 8
    %v352 = vld [vmem:[%s351] sm:$0xff]
    %s353 = scalar_lea.vmem %s5, 16
    %v354 = vld [vmem:[%s353] sm:$0xff]
    %356 = vset.pattern.permute.xlu0 0
    %357 = vperm.xlu0 %356, %v350
    %v358 = vpop.permute.xlu0 %357
    %360 = vrot.lane.b32.xlu0 %v348, 16
    %v361 = vpop.permute.xlu0 %360
    %362 = vrot.lane.b32.xlu0 %v349, 16
    %v363 = vpop.permute.xlu0 %362
    %v364 = vsel %vm94, %v361, %v363
    %v365 = vsel %vm94, %v363, %v361
    %v366 = vmul.f32 %v365, %v60
    %v367 = vmul.f32 %v364, %v61
    %368 = vrot.lane.b32.xlu0 %v366, 1
    %v369 = vpop.permute.xlu0 %368
    %370 = vrot.lane.b32.xlu0 %v367, 1
    %v371 = vpop.permute.xlu0 %370
    %v372 = vsel %vm103, %v369, %v371
    %v373 = vsel %vm103, %v371, %v369
    %v374 = vmul.f32 %v373, %v72
    %v375 = vmul.f32 %v372, %v73
    %v376 = vld [vmem:[%s4] sm:$0xff]
    %378 = vset.pattern.permute.xlu0 0
    %379 = vperm.xlu0 %378, %v376
    %v380 = vpop.permute.xlu0 %379
    %v382 = vmul.f32 %v374, %v380
    %v383 = vmul.f32 %v375, %v380
    %v384 = vadd.f32 %v358, %v382
    %v385 = vadd.f32 %v358, %v383
    %s386 = scalar_lea.vmem %s4, 8
    %v387 = vld [vmem:[%s386] sm:$0xff]
    %389 = vset.pattern.permute.xlu0 0
    %390 = vperm.xlu0 %389, %v387
    %v391 = vpop.permute.xlu0 %390
    %v393 = vmul.f32 %v366, %v391
    %v394 = vmul.f32 %v367, %v391
    %v395 = vadd.f32 %v384, %v393
    %v396 = vadd.f32 %v385, %v394
    %397 = vrot.lane.b32.xlu0 %v366, 127
    %v398 = vpop.permute.xlu0 %397
    %399 = vrot.lane.b32.xlu0 %v367, 127
    %v400 = vpop.permute.xlu0 %399
    %v401 = vsel %vm133, %v398, %v400
    %v402 = vsel %vm133, %v400, %v398
    %v403 = vmul.f32 %v401, %v78
    %v404 = vmul.f32 %v402, %v79
    %s405 = scalar_lea.vmem %s4, 16
    %v406 = vld [vmem:[%s405] sm:$0xff]
    %408 = vset.pattern.permute.xlu0 0
    %409 = vperm.xlu0 %408, %v406
    %v410 = vpop.permute.xlu0 %409
    %v412 = vmul.f32 %v403, %v410
    %v413 = vmul.f32 %v404, %v410
    %v414 = vadd.f32 %v395, %v412
    %v415 = vadd.f32 %v396, %v413
    %416 = vrot.lane.b32.xlu0 %v348, 1
    %v417 = vpop.permute.xlu0 %416
    %418 = vrot.lane.b32.xlu0 %v349, 1
    %v419 = vpop.permute.xlu0 %418
    %v420 = vsel %vm103, %v417, %v419
    %v421 = vsel %vm103, %v419, %v417
    %v422 = vmul.f32 %v421, %v72
    %v423 = vmul.f32 %v420, %v73
    %s424 = scalar_lea.vmem %s4, 24
    %v425 = vld [vmem:[%s424] sm:$0xff]
    %427 = vset.pattern.permute.xlu0 0
    %428 = vperm.xlu0 %427, %v425
    %v429 = vpop.permute.xlu0 %428
    %v431 = vmul.f32 %v422, %v429
    %v432 = vmul.f32 %v423, %v429
    %v433 = vadd.f32 %v414, %v431
    %v434 = vadd.f32 %v415, %v432
    %s435 = scalar_lea.vmem %s4, 32
    %v436 = vld [vmem:[%s435] sm:$0xff]
    %438 = vset.pattern.permute.xlu0 0
    %439 = vperm.xlu0 %438, %v436
    %v440 = vpop.permute.xlu0 %439
    %v442 = vmul.f32 %v348, %v440
    %v443 = vmul.f32 %v349, %v440
    %v444 = vadd.f32 %v433, %v442
    %v445 = vadd.f32 %v434, %v443
    %446 = vrot.lane.b32.xlu0 %v348, 127
    %v447 = vpop.permute.xlu0 %446
    %448 = vrot.lane.b32.xlu0 %v349, 127
    %v449 = vpop.permute.xlu0 %448
    %v450 = vsel %vm133, %v447, %v449
    %v451 = vsel %vm133, %v449, %v447
    %v452 = vmul.f32 %v450, %v78
    %v453 = vmul.f32 %v451, %v79
    %s454 = scalar_lea.vmem %s4, 40
    %v455 = vld [vmem:[%s454] sm:$0xff]
    %457 = vset.pattern.permute.xlu0 0
    %458 = vperm.xlu0 %457, %v455
    %v459 = vpop.permute.xlu0 %458
    %v461 = vmul.f32 %v452, %v459
    %v462 = vmul.f32 %v453, %v459
    %v463 = vadd.f32 %v444, %v461
    %v464 = vadd.f32 %v445, %v462
    %465 = vrot.lane.b32.xlu0 %v348, 112
    %v466 = vpop.permute.xlu0 %465
    %467 = vrot.lane.b32.xlu0 %v349, 112
    %v468 = vpop.permute.xlu0 %467
    %v469 = vsel %vm202, %v466, %v468
    %v470 = vsel %vm202, %v468, %v466
    %v471 = vmul.f32 %v469, %v66
    %v472 = vmul.f32 %v470, %v67
    %473 = vrot.lane.b32.xlu0 %v471, 1
    %v474 = vpop.permute.xlu0 %473
    %475 = vrot.lane.b32.xlu0 %v472, 1
    %v476 = vpop.permute.xlu0 %475
    %v477 = vsel %vm103, %v474, %v476
    %v478 = vsel %vm103, %v476, %v474
    %v479 = vmul.f32 %v478, %v72
    %v480 = vmul.f32 %v477, %v73
    %s481 = scalar_lea.vmem %s4, 48
    %v482 = vld [vmem:[%s481] sm:$0xff]
    %484 = vset.pattern.permute.xlu0 0
    %485 = vperm.xlu0 %484, %v482
    %v486 = vpop.permute.xlu0 %485
    %v488 = vmul.f32 %v479, %v486
    %v489 = vmul.f32 %v480, %v486
    %v490 = vadd.f32 %v463, %v488
    %v491 = vadd.f32 %v464, %v489
    %s492 = scalar_lea.vmem %s4, 56
    %v493 = vld [vmem:[%s492] sm:$0xff]
    %495 = vset.pattern.permute.xlu0 0
    %496 = vperm.xlu0 %495, %v493
    %v497 = vpop.permute.xlu0 %496
    %v499 = vmul.f32 %v471, %v497
    %v500 = vmul.f32 %v472, %v497
    %v501 = vadd.f32 %v490, %v499
    %v502 = vadd.f32 %v491, %v500
    %503 = vrot.lane.b32.xlu0 %v471, 127
    %v504 = vpop.permute.xlu0 %503
    %505 = vrot.lane.b32.xlu0 %v472, 127
    %v506 = vpop.permute.xlu0 %505
    %v507 = vsel %vm133, %v504, %v506
    %v508 = vsel %vm133, %v506, %v504
    %v509 = vmul.f32 %v507, %v78
    %v510 = vmul.f32 %v508, %v79
    %s511 = scalar_lea.vmem %s4, 64
    %v512 = vld [vmem:[%s511] sm:$0xff]
    %514 = vset.pattern.permute.xlu0 0
    %515 = vperm.xlu0 %514, %v512
    %v516 = vpop.permute.xlu0 %515
    %v518 = vmul.f32 %v509, %v516
    %v519 = vmul.f32 %v510, %v516
    %v520 = vadd.f32 %v501, %v518
    %v521 = vadd.f32 %v502, %v519
    %v522 = vmax.f32 %v520, 0.0
    %v523 = vmax.f32 %v521, 0.0
    %v524 = vld [vmem:[%s6] sm:$0xff]
    %v526 = vsel %vm259, %v524, 0
    %528 = vmatprep.subr.mxu0 %v523
    %529 = vmatpush1.msra.mxu0 %v522
    %530 = vmatprep.subr.mxu0 0.0
    %531 = vmatpush1.msra.mxu0 0.0
    %532 = vmatprep.subr.mxu0 0.0
    %533 = vmatpush1.msra.mxu0 0.0
    %534 = vmatprep.subr.mxu0 0.0
    %535 = vmatpush1.msra.mxu0 0.0
    %536 = vmatprep.subr.mxu0 0.0
    %537 = vmatpush1.msra.mxu0 0.0
    %538 = vmatprep.subr.mxu0 0.0
    %539 = vmatpush1.msra.mxu0 0.0
    %540 = vmatprep.subr.mxu0 0.0
    %541 = vmatpush1.msra.mxu0 0.0
    %542 = vmatprep.subr.mxu0 0.0
    %543 = vmatpush1.msra.mxu0 0.0
    %544 = vmatprep.subr.mxu0 0.0
    %545 = vmatpush1.msra.mxu0 0.0
    %546 = vmatprep.subr.mxu0 0.0
    %547 = vmatpush1.msra.mxu0 0.0
    %548 = vmatprep.subr.mxu0 0.0
    %549 = vmatpush1.msra.mxu0 0.0
    %550 = vmatprep.subr.mxu0 0.0
    %551 = vmatpush1.msra.mxu0 0.0
    %552 = vmatprep.subr.mxu0 0.0
    %553 = vmatpush1.msra.mxu0 0.0
    %554 = vmatprep.subr.mxu0 0.0
    %555 = vmatpush1.msra.mxu0 0.0
    %556 = vmatprep.subr.mxu0 0.0
    %557 = vmatpush1.msra.mxu0 0.0
    %558 = vmatprep.subr.mxu0 0.0
    %559 = vmatpush1.msra.mxu0 0.0
    %560 = vmatprep.subr.mxu0 0.0
    %561 = vmatpush1.msra.mxu0 0.0
    %562 = vmatprep.subr.mxu0 0.0
    %563 = vmatpush1.msra.mxu0 0.0
    %564 = vmatprep.subr.mxu0 0.0
    %565 = vmatpush1.msra.mxu0 0.0
    %566 = vmatprep.subr.mxu0 0.0
    %567 = vmatpush1.msra.mxu0 0.0
    %568 = vmatprep.subr.mxu0 0.0
    %569 = vmatpush1.msra.mxu0 0.0
    %570 = vmatprep.subr.mxu0 0.0
    %571 = vmatpush1.msra.mxu0 0.0
    %572 = vmatprep.subr.mxu0 0.0
    %573 = vmatpush1.msra.mxu0 0.0
    %574 = vmatprep.subr.mxu0 0.0
    %575 = vmatpush1.msra.mxu0 0.0
    %576 = vmatprep.subr.mxu0 0.0
    %577 = vmatpush1.msra.mxu0 0.0
    %578 = vmatprep.subr.mxu0 0.0
    %579 = vmatpush1.msra.mxu0 0.0
    %580 = vmatprep.subr.mxu0 0.0
    %581 = vmatpush1.msra.mxu0 0.0
    %582 = vmatprep.subr.mxu0 0.0
    %583 = vmatpush1.msra.mxu0 0.0
    %584 = vmatprep.subr.mxu0 0.0
    %585 = vmatpush1.msra.mxu0 0.0
    %586 = vmatprep.subr.mxu0 0.0
    %587 = vmatpush1.msra.mxu0 0.0
    %588 = vmatprep.subr.mxu0 0.0
    %589 = vmatpush1.msra.mxu0 0.0
    %590 = vmatprep.subr.mxu0 0.0
    %591 = vmatpush1.msra.mxu0 0.0
    %592 = vmatprep.mubr.f32.mxu0 0.0
    %593 = vmatmul.mubr.f32.gmra.mrb[0].mxu0 %v526
    %v594 = vpop.f32.mrb[0].mxu0
    %v595 = vadd.f32 0.0, %v594
    %v596 = vpop.f32.mrb[0].mxu0
    %v597 = vadd.f32 0.0, %v596
    %598 = vdwg.mxu0
    %600 = vset.pattern.permute.xlu0 0
    %601 = vperm.xlu0 %600, %v352
    %v602 = vpop.permute.xlu0 %601
    %v604 = vmul.f32 %v595, %v602
    %v605 = vmul.f32 %v597, %v602
    %607 = vset.pattern.permute.xlu0 0
    %608 = vperm.xlu0 %607, %v354
    %v609 = vpop.permute.xlu0 %608
    %v611 = vadd.f32 %v604, %v609
    %v612 = vadd.f32 %v605, %v609
    %v613 = vadd.f32 %v611, %v27
    %v614 = vadd.f32 %v612, %v28
    %v615 = vmax.f32 %v613, 0.0
    %v616 = vmax.f32 %v614, 0.0
    %617 = vst [vmem:[#allocation2] sm:$0xff] %v615
    %618 = vst [vmem:[#allocation2 + $0x8] sm:$0xff] %v616
    // Predicated region
    $region30: #{tpu_custom_call.1} parent=1 // pred_check
      _
    $region31: #{tpu_custom_call.1} parent=1 // pred_check_branch
      %620 = sbr.rel (0) target = $region33
    $region32: #{tpu_custom_call.1} parent=1 // pred_region
      %s622 = ssub.s32 256, 256
      %623 = vsyncadd [#allocation3], %s622
      %s625 = sshll.u32 [#allocation2], 4
      %s626 = int_to_ptr.vmem [resolvable:$true] %s625
      %628 = dma.vmem_to_hbm [thread:$0]  %s626, 256, %s7, [#allocation3]
    $region33: #{tpu_custom_call.1} parent=1 // pred_fallthru
      _
    // Predicated region
    $region34: #{tpu_custom_call.1} parent=1 // pred_check
      _
    $region35: #{tpu_custom_call.1} parent=1 // pred_check_branch
      %630 = sbr.rel (0) target = $region37
    $region36: #{tpu_custom_call.1} parent=1 // pred_region
      %631 = dma.done [#allocation3], 256
    $region37: #{tpu_custom_call.1} parent=1 // pred_fallthru
      _
    %632 = vsyncpa [#allocation3], 1

</llo_original>
